<compile_context>
chip_gen: v7x
topology: tpu7x:2x2x1
jax: 0.10.0
libtpu: 0.0.40
codegen_flags: <defaults>
</compile_context>

<pallas_src>
import math
from functools import partial

import jax
import jax.numpy as jnp
from jax.experimental import pallas as pl
from jax.experimental.pallas import tpu as pltpu


# ----------------------------------------------------------------------------
# helpers
# ----------------------------------------------------------------------------
def _pick_tile(dim, candidates):
    """Largest candidate tile that divides `dim`, else the full dim."""
    for c in candidates:
        if dim % c == 0:
            return c
    return dim


# ----------------------------------------------------------------------------
# Kernel 1: tiled matmul  y = x @ w_t   (w_t is (in, out): no in-kernel .T)
# ----------------------------------------------------------------------------
def matmul_kernel(x_ref, w_ref, o_ref, acc_ref):
    @pl.when(pl.program_id(2) == 0)
    def _():
        acc_ref[...] = jnp.zeros_like(acc_ref)

    acc_ref[...] += jnp.dot(x_ref[...], w_ref[...],
                            preferred_element_type=jnp.float32)

    @pl.when(pl.program_id(2) == pl.num_programs(2) - 1)
    def _():
        o_ref[...] = acc_ref[...].astype(o_ref.dtype)


def linear(x2d, w_t):
    """x2d: (M, K), w_t: (K, N) -> (M, N).  MXU-sized M/N/K tiles."""
    M, K = x2d.shape
    _, N = w_t.shape
    tm = _pick_tile(M, (512, 256, 128, 64, 32, 16, 8))
    tn = _pick_tile(N, (512, 256, 128))
    tk = _pick_tile(K, (512, 256, 128))
    return pl.pallas_call(
        matmul_kernel,
        out_shape=jax.ShapeDtypeStruct((M, N), x2d.dtype),
        grid_spec=pltpu.PrefetchScalarGridSpec(
            num_scalar_prefetch=0,
            grid=(M // tm, N // tn, K // tk),
            in_specs=[
                pl.BlockSpec((tm, tk), lambda i, j, k: (i, k)),
                pl.BlockSpec((tk, tn), lambda i, j, k: (k, j)),
            ],
            out_specs=pl.BlockSpec((tm, tn), lambda i, j, k: (i, j)),
            scratch_shapes=[pltpu.VMEM((tm, tn), jnp.float32)],
        ),
        compiler_params=pltpu.CompilerParams(
            dimension_semantics=("parallel", "parallel", "arbitrary")),
    )(x2d, w_t)


# ----------------------------------------------------------------------------
# Kernel 2: flash-style causal attention with in-kernel (rotate-half) RoPE
# ----------------------------------------------------------------------------
def _rope_rotate(x, cos_h, sin_h):
    # x columns are de-interleaved per head ([evens | odds]); cos/sin are
    # half-width (tile, d_k/2).  Pure VPU work + one lane concat (no MXU).
    h = x.shape[-1] // 2
    x1 = x[:, :h]
    x2 = x[:, h:]
    return jnp.concatenate([x1 * cos_h - x2 * sin_h,
                            x2 * cos_h + x1 * sin_h], axis=-1)


def flash_attn_kernel(q_ref, k_ref, v_ref, cq_ref, sq_ref, ck_ref, sk_ref,
                      o_ref, m_sc, l_sc, acc_sc):
    qi = pl.program_id(2)
    ki = pl.program_id(3)
    tq = q_ref.shape[0]
    tk = k_ref.shape[0]

    @pl.when(ki == 0)
    def _():
        m_sc[...] = jnp.full_like(m_sc, -jnp.inf)
        l_sc[...] = jnp.zeros_like(l_sc)
        acc_sc[...] = jnp.zeros_like(acc_sc)

    # Skip key/value tiles that lie entirely in the causally-masked future.
    @pl.when(ki * tk <= qi * tq + tq - 1)
    def _():
        # 1/sqrt(d_k) is folded into the q-side cos/sin tables.
        q = _rope_rotate(q_ref[...], cq_ref[...], sq_ref[...])
        k = _rope_rotate(k_ref[...], ck_ref[...], sk_ref[...])

        s = jax.lax.dot_general(q, k, (((1,), (1,)), ((), ())),
                                preferred_element_type=jnp.float32)  # (tq, tk)

        row = qi * tq + jax.lax.broadcasted_iota(jnp.int32, (tq, tk), 0)
        col = ki * tk + jax.lax.broadcasted_iota(jnp.int32, (tq, tk), 1)
        s = jnp.where(col <= row, s, -jnp.inf)

        m_prev = m_sc[...]
        m_new = jnp.maximum(m_prev, jnp.max(s, axis=-1, keepdims=True))
        alpha = jnp.exp(m_prev - m_new)
        p = jnp.exp(s - m_new)
        l_sc[...] = alpha * l_sc[...] + jnp.sum(p, axis=-1, keepdims=True)
        acc_sc[...] = alpha * acc_sc[...] + jnp.dot(
            p.astype(v_ref.dtype), v_ref[...], preferred_element_type=jnp.float32)
        m_sc[...] = m_new

    @pl.when(ki == pl.num_programs(3) - 1)
    def _():
        # approx=True would use the EUP but loosens the 1e-4-level check below;
        # keep the exact reciprocal.
        o_ref[...] = (acc_sc[...] * pl.reciprocal(l_sc[...], approx=False)
                      ).astype(o_ref.dtype)


def flash_attention(qkv, cos_q, sin_q, cos_k, sin_k):
    """qkv: (3, B, H, S, d_k) (q/k columns de-interleaved per head);
    cos_*/sin_*: (S, d_k//2)."""
    _, B, H, S, dk = qkv.shape
    tq = _pick_tile(S, (256, 128))
    tk = _pick_tile(S, (256, 128))

    def qkv_spec(proj, over_kv):
        t = tk if over_kv else tq

        def imap(b, h, qi, ki, _proj=proj, _kv=over_kv):
            return (_proj, b, h, ki if _kv else qi, 0)

        return pl.BlockSpec(
            (pl.Squeezed(), pl.Squeezed(), pl.Squeezed(), t, dk), imap)

    q_tab = pl.BlockSpec((tq, dk // 2), lambda b, h, qi, ki: (qi, 0))
    k_tab = pl.BlockSpec((tk, dk // 2), lambda b, h, qi, ki: (ki, 0))

    # NOTE: if d_k < 128, packing several heads per grid step would give
    # lane-dense output stores; kept per-head here for clarity.
    return pl.pallas_call(
        flash_attn_kernel,
        out_shape=jax.ShapeDtypeStruct((B, H, S, dk), qkv.dtype),
        grid_spec=pltpu.PrefetchScalarGridSpec(
            num_scalar_prefetch=0,
            grid=(B, H, S // tq, S // tk),
            in_specs=[
                qkv_spec(0, False),   # Q  (same HBM buffer, different views)
                qkv_spec(1, True),    # K
                qkv_spec(2, True),    # V
                q_tab, q_tab,         # cos_q, sin_q (pre-scaled by 1/sqrt(dk))
                k_tab, k_tab,         # cos_k, sin_k
            ],
            out_specs=pl.BlockSpec(
                (pl.Squeezed(), pl.Squeezed(), tq, dk),
                lambda b, h, qi, ki: (b, h, qi, 0)),
            scratch_shapes=[
                pltpu.VMEM((tq, 1), jnp.float32),   # running max
                pltpu.VMEM((tq, 1), jnp.float32),   # running sum
                pltpu.VMEM((tq, dk), jnp.float32),  # output accumulator
            ],
        ),
        compiler_params=pltpu.CompilerParams(
            dimension_semantics=("parallel", "parallel", "parallel", "arbitrary")),
    )(qkv, qkv, qkv, cos_q, sin_q, cos_k, sin_k)


# ----------------------------------------------------------------------------
# Module wrapper (parameter setup + glue in plain JAX)
# ----------------------------------------------------------------------------
def init_linear_weight(key, in_features, out_features):
    std = (2.0 / (in_features + out_features)) ** 0.5
    return (
        jax.random.truncated_normal(key, -3.0, 3.0, (out_features, in_features),
                                    dtype=jnp.float32) * std
    )


def make_params(key, d_model):
    kq, kk, kv, ko = jax.random.split(key, 4)
    return {
        "q": init_linear_weight(kq, d_model, d_model),
        "k": init_linear_weight(kk, d_model, d_model),
        "v": init_linear_weight(kv, d_model, d_model),
        "o": init_linear_weight(ko, d_model, d_model),
    }


def _deinterleave_head_rows(w, num_heads):
    """Permute rows of a (d_model, d_in) projection weight so that, within each
    head, even feature indices come first, then odd ones.  Applying the same
    permutation to Q and K leaves QK^T unchanged, and in that basis RoPE takes
    the cheap rotate-half form (no pair-swap permutation matmul in-kernel)."""
    out_f = w.shape[0]
    dk = out_f // num_heads
    idx = jnp.arange(out_f).reshape(num_heads, dk)
    perm = jnp.concatenate([idx[:, 0::2], idx[:, 1::2]], axis=1).reshape(-1)
    return w[perm]


def make_rope_tables(theta, d_k, token_positions):
    # Matches RotatyPositionalEmbedding buffers, gathered at token_positions.
    freq = 1.0 / theta ** (jnp.arange(0, d_k, 2, dtype=jnp.float32) / d_k)
    freqs = jnp.outer(token_positions.astype(jnp.float32), freq)   # (S, d_k//2)
    return jnp.cos(freqs), jnp.sin(freqs)


@partial(jax.jit, static_argnames=("num_heads", "theta"))
def multihead_self_attention(params, x, token_positions, *, num_heads, theta):
    B, S, D = x.shape
    dk = D // num_heads
    scale = 1.0 / math.sqrt(dk)

    # Fused QKV weight (the module's stretch goal): de-interleave q/k head rows
    # for the rotate-half RoPE basis and pre-transpose to (in, out) so the
    # matmul kernel never transposes weights.  In a real model this would be
    # done once at parameter-load time, not per call.
    w_qkv_t = jnp.concatenate(
        [_deinterleave_head_rows(params["q"], num_heads),
         _deinterleave_head_rows(params["k"], num_heads),
         params["v"]], axis=0).T                                    # (D, 3D)
    w_o_t = params["o"].T                                           # (D, D)

    x2d = x.reshape(B * S, D)
    qkv = linear(x2d, w_qkv_t)                                      # one pass over x

    # (B*S, 3D) -> (3, B, H, S, d_k): single layout change in HBM; the
    # attention kernel reads Q/K/V directly from this buffer (passed three
    # times with different index maps), so no per-tensor slice copies.
    qkv = qkv.reshape(B, S, 3, num_heads, dk).transpose(2, 0, 3, 1, 4)

    cos_t, sin_t = make_rope_tables(theta, dk, token_positions)
    attn = flash_attention(qkv, cos_t * scale, sin_t * scale, cos_t, sin_t)

    merged = attn.transpose(0, 2, 1, 3).reshape(B * S, D)           # merge heads
    return linear(merged, w_o_t).reshape(B, S, D)


# ----------------------------------------------------------------------------
# Pure-JAX reference (mirrors the PyTorch module) for a correctness check
# ----------------------------------------------------------------------------
def reference_mhsa(params, x, token_positions, *, num_heads, theta):
    B, S, D = x.shape
    d_k = D // num_heads

    def lin(t, w):
        return jnp.einsum("...i,oi->...o", t, w)

    def split_heads(t):
        return t.reshape(B, S, num_heads, d_k).transpose(0, 2, 1, 3)

    Q, K, V = (split_heads(lin(x, params[n])) for n in ("q", "k", "v"))

    freq = 1.0 / theta ** (jnp.arange(0, d_k, 2, dtype=jnp.float32) / d_k)
    freqs = jnp.outer(token_positions.astype(jnp.float32), freq)
    cos, sin = jnp.cos(freqs), jnp.sin(freqs)

    def rope(t):
        tp = t.reshape(B, num_heads, S, d_k // 2, 2)
        tr, ti = tp[..., 0], tp[..., 1]
        rr = tr * cos - ti * sin
        ri = tr * sin + ti * cos
        return jnp.stack([rr, ri], axis=-1).reshape(B, num_heads, S, d_k)

    Q, K = rope(Q), rope(K)
    scores = jnp.einsum("bhqd,bhkd->bhqk", Q, K)
    causal = jnp.tril(jnp.ones((S, S), bool))
    scores = jnp.where(causal, scores, -jnp.inf) / math.sqrt(d_k)
    scores = scores - jnp.max(scores, axis=-1, keepdims=True)
    p = jnp.exp(scores)
    p = p / jnp.sum(p, axis=-1, keepdims=True)
    out = jnp.einsum("bhqk,bhkd->bhqd", p, V)
    out = out.transpose(0, 2, 1, 3).reshape(B, S, D)
    return lin(out, params["o"])


if __name__ == "__main__":
    # small shapes consistent with the module
    batch, seq, d_model, num_heads = 2, 8, 32, 4
    theta = 10000.0

    key = jax.random.PRNGKey(0)
    kp, kx = jax.random.split(key)
    params = make_params(kp, d_model)
    x = jax.random.normal(kx, (batch, seq, d_model), dtype=jnp.float32)
    token_positions = jnp.arange(seq, dtype=jnp.int32)

    out = multihead_self_attention(
        params, x, token_positions, num_heads=num_heads, theta=theta
    )
    out = jax.block_until_ready(out)

    ref = reference_mhsa(params, x, token_positions, num_heads=num_heads, theta=theta)
    assert out.shape == (batch, seq, d_model)
    assert jnp.allclose(out, ref, atol=2e-4, rtol=2e-4), "mismatch vs reference"

    print("KERNEL_OK")
</pallas_src>

<mosaic_0001>
module attributes {stable_mosaic.version = 11 : i64} {
  func.func @matmul_kernel(%arg0: i32, %arg1: i32, %arg2: i32, %arg3: memref<16x32xf32, #tpu.memory_space<vmem>>, %arg4: memref<32x96xf32, #tpu.memory_space<vmem>>, %arg5: memref<16x96xf32, #tpu.memory_space<vmem>>, %arg6: memref<16x96xf32, #tpu.memory_space<vmem>>) attributes {dimension_semantics = [#tpu.dimension_semantics<parallel>, #tpu.dimension_semantics<parallel>, #tpu.dimension_semantics<arbitrary>], iteration_bounds = array<i64: 1, 1, 1>, scalar_prefetch = 0 : i64, scratch_operands = 1 : i64, tpu.core_type = #tpu.core_type<tc>, window_params = [{transform_indices = @transform_0, window_bounds = array<i64: 16, 32>}, {transform_indices = @transform_1, window_bounds = array<i64: 32, 96>}, {transform_indices = @transform_2, window_bounds = array<i64: 16, 96>}]} {
    %c0_i32 = arith.constant 0 : i32
    %0 = arith.cmpi eq, %arg2, %c0_i32 : i32
    %1 = arith.extui %0 : i1 to i32
    %c0_i32_0 = arith.constant 0 : i32
    %2 = arith.cmpi ne, %1, %c0_i32_0 : i32
    scf.if %2 {
      %cst_10 = arith.constant 0.000000e+00 : f32
      %12 = vector.broadcast %cst_10 : f32 to vector<16x96xf32>
      %c0_11 = arith.constant 0 : index
      %c0_12 = arith.constant 0 : index
      %13 = vector.load %arg6[%c0_11, %c0_12] : memref<16x96xf32, #tpu.memory_space<vmem>>, vector<16x96xf32>
      tpu.vector_store %arg6[%c0_11, %c0_12], %12 {strides = array<i32>} : memref<16x96xf32, #tpu.memory_space<vmem>>, vector<16x96xf32>,
    } else {
    }
    %c0 = arith.constant 0 : index
    %c0_1 = arith.constant 0 : index
    %3 = vector.load %arg6[%c0, %c0_1] : memref<16x96xf32, #tpu.memory_space<vmem>>, vector<16x96xf32>
    %c0_2 = arith.constant 0 : index
    %c0_3 = arith.constant 0 : index
    %4 = vector.load %arg3[%c0_2, %c0_3] : memref<16x32xf32, #tpu.memory_space<vmem>>, vector<16x32xf32>
    %c0_4 = arith.constant 0 : index
    %c0_5 = arith.constant 0 : index
    %5 = vector.load %arg4[%c0_4, %c0_5] : memref<32x96xf32, #tpu.memory_space<vmem>>, vector<32x96xf32>
    %cst = arith.constant dense<0.000000e+00> : vector<16x96xf32>
    %6 = tpu.matmul %4, %5, %cst {dimension_numbers = #tpu.dot_dimension_numbers<[1], [0], [0], [1], [0, 0, 1, 1], [], []>} : vector<16x32xf32>, vector<32x96xf32>, vector<16x96xf32> -> vector<16x96xf32>
    %7 = arith.addf %3, %6 : vector<16x96xf32>
    %c0_6 = arith.constant 0 : index
    %c0_7 = arith.constant 0 : index
    %8 = vector.load %arg6[%c0_6, %c0_7] : memref<16x96xf32, #tpu.memory_space<vmem>>, vector<16x96xf32>
    tpu.vector_store %arg6[%c0_6, %c0_7], %7 {strides = array<i32>} : memref<16x96xf32, #tpu.memory_space<vmem>>, vector<16x96xf32>,
    %c0_i32_8 = arith.constant 0 : i32
    %9 = arith.cmpi eq, %arg2, %c0_i32_8 : i32
    %10 = arith.extui %9 : i1 to i32
    %c0_i32_9 = arith.constant 0 : i32
    %11 = arith.cmpi ne, %10, %c0_i32_9 : i32
    scf.if %11 {
      %c0_10 = arith.constant 0 : index
      %c0_11 = arith.constant 0 : index
      %12 = vector.load %arg6[%c0_10, %c0_11] : memref<16x96xf32, #tpu.memory_space<vmem>>, vector<16x96xf32>
      %c0_12 = arith.constant 0 : index
      %c0_13 = arith.constant 0 : index
      %13 = vector.load %arg5[%c0_12, %c0_13] : memref<16x96xf32, #tpu.memory_space<vmem>>, vector<16x96xf32>
      tpu.vector_store %arg5[%c0_12, %c0_13], %12 {strides = array<i32>} : memref<16x96xf32, #tpu.memory_space<vmem>>, vector<16x96xf32>,
    } else {
    }
    return
  }
  func.func @transform_0(%arg0: i32, %arg1: i32, %arg2: i32) -> (i32, i32) {
    %c0_i32 = arith.constant 0 : i32
    return %arg0, %arg2 : i32, i32
  }
  func.func @transform_1(%arg0: i32, %arg1: i32, %arg2: i32) -> (i32, i32) {
    %c0_i32 = arith.constant 0 : i32
    return %arg2, %arg1 : i32, i32
  }
  func.func @transform_2(%arg0: i32, %arg1: i32, %arg2: i32) -> (i32, i32) {
    %c0_i32 = arith.constant 0 : i32
    return %arg0, %arg1 : i32, i32
  }
}

module attributes {stable_mosaic.version = 11 : i64} {
  func.func @matmul_kernel(%arg0: i32, %arg1: i32, %arg2: i32, %arg3: memref<16x32xf32, #tpu.memory_space<vmem>>, %arg4: memref<32x32xf32, #tpu.memory_space<vmem>>, %arg5: memref<16x32xf32, #tpu.memory_space<vmem>>, %arg6: memref<16x32xf32, #tpu.memory_space<vmem>>) attributes {dimension_semantics = [#tpu.dimension_semantics<parallel>, #tpu.dimension_semantics<parallel>, #tpu.dimension_semantics<arbitrary>], iteration_bounds = array<i64: 1, 1, 1>, scalar_prefetch = 0 : i64, scratch_operands = 1 : i64, tpu.core_type = #tpu.core_type<tc>, window_params = [{transform_indices = @transform_0, window_bounds = array<i64: 16, 32>}, {transform_indices = @transform_1, window_bounds = array<i64: 32, 32>}, {transform_indices = @transform_2, window_bounds = array<i64: 16, 32>}]} {
    %c0_i32 = arith.constant 0 : i32
    %0 = arith.cmpi eq, %arg2, %c0_i32 : i32
    %1 = arith.extui %0 : i1 to i32
    %c0_i32_0 = arith.constant 0 : i32
    %2 = arith.cmpi ne, %1, %c0_i32_0 : i32
    scf.if %2 {
      %cst_10 = arith.constant 0.000000e+00 : f32
      %12 = vector.broadcast %cst_10 : f32 to vector<16x32xf32>
      %c0_11 = arith.constant 0 : index
      %c0_12 = arith.constant 0 : index
      %13 = vector.load %arg6[%c0_11, %c0_12] : memref<16x32xf32, #tpu.memory_space<vmem>>, vector<16x32xf32>
      tpu.vector_store %arg6[%c0_11, %c0_12], %12 {strides = array<i32>} : memref<16x32xf32, #tpu.memory_space<vmem>>, vector<16x32xf32>,
    } else {
    }
    %c0 = arith.constant 0 : index
    %c0_1 = arith.constant 0 : index
    %3 = vector.load %arg6[%c0, %c0_1] : memref<16x32xf32, #tpu.memory_space<vmem>>, vector<16x32xf32>
    %c0_2 = arith.constant 0 : index
    %c0_3 = arith.constant 0 : index
    %4 = vector.load %arg3[%c0_2, %c0_3] : memref<16x32xf32, #tpu.memory_space<vmem>>, vector<16x32xf32>
    %c0_4 = arith.constant 0 : index
    %c0_5 = arith.constant 0 : index
    %5 = vector.load %arg4[%c0_4, %c0_5] : memref<32x32xf32, #tpu.memory_space<vmem>>, vector<32x32xf32>
    %cst = arith.constant dense<0.000000e+00> : vector<16x32xf32>
    %6 = tpu.matmul %4, %5, %cst {dimension_numbers = #tpu.dot_dimension_numbers<[1], [0], [0], [1], [0, 0, 1, 1], [], []>} : vector<16x32xf32>, vector<32x32xf32>, vector<16x32xf32> -> vector<16x32xf32>
    %7 = arith.addf %3, %6 : vector<16x32xf32>
    %c0_6 = arith.constant 0 : index
    %c0_7 = arith.constant 0 : index
    %8 = vector.load %arg6[%c0_6, %c0_7] : memref<16x32xf32, #tpu.memory_space<vmem>>, vector<16x32xf32>
    tpu.vector_store %arg6[%c0_6, %c0_7], %7 {strides = array<i32>} : memref<16x32xf32, #tpu.memory_space<vmem>>, vector<16x32xf32>,
    %c0_i32_8 = arith.constant 0 : i32
    %9 = arith.cmpi eq, %arg2, %c0_i32_8 : i32
    %10 = arith.extui %9 : i1 to i32
    %c0_i32_9 = arith.constant 0 : i32
    %11 = arith.cmpi ne, %10, %c0_i32_9 : i32
    scf.if %11 {
      %c0_10 = arith.constant 0 : index
      %c0_11 = arith.constant 0 : index
      %12 = vector.load %arg6[%c0_10, %c0_11] : memref<16x32xf32, #tpu.memory_space<vmem>>, vector<16x32xf32>
      %c0_12 = arith.constant 0 : index
      %c0_13 = arith.constant 0 : index
      %13 = vector.load %arg5[%c0_12, %c0_13] : memref<16x32xf32, #tpu.memory_space<vmem>>, vector<16x32xf32>
      tpu.vector_store %arg5[%c0_12, %c0_13], %12 {strides = array<i32>} : memref<16x32xf32, #tpu.memory_space<vmem>>, vector<16x32xf32>,
    } else {
    }
    return
  }
  func.func @transform_0(%arg0: i32, %arg1: i32, %arg2: i32) -> (i32, i32) {
    %c0_i32 = arith.constant 0 : i32
    return %arg0, %arg2 : i32, i32
  }
  func.func @transform_1(%arg0: i32, %arg1: i32, %arg2: i32) -> (i32, i32) {
    %c0_i32 = arith.constant 0 : i32
    return %arg2, %arg1 : i32, i32
  }
  func.func @transform_2(%arg0: i32, %arg1: i32, %arg2: i32) -> (i32, i32) {
    %c0_i32 = arith.constant 0 : i32
    return %arg0, %arg1 : i32, i32
  }
}

module attributes {stable_mosaic.version = 11 : i64} {
  func.func @flash_attn_kernel(%arg0: i32, %arg1: i32, %arg2: i32, %arg3: i32, %arg4: memref<1x1x1x8x8xf32, #tpu.memory_space<vmem>>, %arg5: memref<1x1x1x8x8xf32, #tpu.memory_space<vmem>>, %arg6: memref<1x1x1x8x8xf32, #tpu.memory_space<vmem>>, %arg7: memref<8x4xf32, #tpu.memory_space<vmem>>, %arg8: memref<8x4xf32, #tpu.memory_space<vmem>>, %arg9: memref<8x4xf32, #tpu.memory_space<vmem>>, %arg10: memref<8x4xf32, #tpu.memory_space<vmem>>, %arg11: memref<1x1x8x8xf32, #tpu.memory_space<vmem>>, %arg12: memref<8x1xf32, #tpu.memory_space<vmem>>, %arg13: memref<8x1xf32, #tpu.memory_space<vmem>>, %arg14: memref<8x8xf32, #tpu.memory_space<vmem>>) attributes {dimension_semantics = [#tpu.dimension_semantics<parallel>, #tpu.dimension_semantics<parallel>, #tpu.dimension_semantics<parallel>, #tpu.dimension_semantics<arbitrary>], iteration_bounds = array<i64: 2, 4, 1, 1>, scalar_prefetch = 0 : i64, scratch_operands = 3 : i64, tpu.core_type = #tpu.core_type<tc>, window_params = [{transform_indices = @transform_0, window_bounds = array<i64: 1, 1, 1, 8, 8>}, {transform_indices = @transform_1, window_bounds = array<i64: 1, 1, 1, 8, 8>}, {transform_indices = @transform_2, window_bounds = array<i64: 1, 1, 1, 8, 8>}, {transform_indices = @transform_3, window_bounds = array<i64: 8, 4>}, {transform_indices = @transform_4, window_bounds = array<i64: 8, 4>}, {transform_indices = @transform_5, window_bounds = array<i64: 8, 4>}, {transform_indices = @transform_6, window_bounds = array<i64: 8, 4>}, {transform_indices = @transform_7, window_bounds = array<i64: 1, 1, 8, 8>}]} {
    %c0_i32 = arith.constant 0 : i32
    %0 = arith.cmpi eq, %arg3, %c0_i32 : i32
    %1 = arith.extui %0 : i1 to i32
    %c0_i32_0 = arith.constant 0 : i32
    %2 = arith.cmpi ne, %1, %c0_i32_0 : i32
    scf.if %2 {
      %cst = arith.constant 0xFF800000 : f32
      %13 = vector.broadcast %cst : f32 to vector<8x1xf32>
      %c0 = arith.constant 0 : index
      %c0_6 = arith.constant 0 : index
      %14 = vector.load %arg12[%c0, %c0_6] : memref<8x1xf32, #tpu.memory_space<vmem>>, vector<8x1xf32>
      tpu.vector_store %arg12[%c0, %c0_6], %13 {strides = array<i32>} : memref<8x1xf32, #tpu.memory_space<vmem>>, vector<8x1xf32>,
      %cst_7 = arith.constant 0.000000e+00 : f32
      %15 = vector.broadcast %cst_7 : f32 to vector<8x1xf32>
      %c0_8 = arith.constant 0 : index
      %c0_9 = arith.constant 0 : index
      %16 = vector.load %arg13[%c0_8, %c0_9] : memref<8x1xf32, #tpu.memory_space<vmem>>, vector<8x1xf32>
      tpu.vector_store %arg13[%c0_8, %c0_9], %15 {strides = array<i32>} : memref<8x1xf32, #tpu.memory_space<vmem>>, vector<8x1xf32>,
      %cst_10 = arith.constant 0.000000e+00 : f32
      %17 = vector.broadcast %cst_10 : f32 to vector<8x8xf32>
      %c0_11 = arith.constant 0 : index
      %c0_12 = arith.constant 0 : index
      %18 = vector.load %arg14[%c0_11, %c0_12] : memref<8x8xf32, #tpu.memory_space<vmem>>, vector<8x8xf32>
      tpu.vector_store %arg14[%c0_11, %c0_12], %17 {strides = array<i32>} : memref<8x8xf32, #tpu.memory_space<vmem>>, vector<8x8xf32>,
    } else {
    }
    %c8_i32 = arith.constant 8 : i32
    %3 = arith.muli %arg3, %c8_i32 : i32
    %c8_i32_1 = arith.constant 8 : i32
    %4 = arith.muli %arg2, %c8_i32_1 : i32
    %c8_i32_2 = arith.constant 8 : i32
    %5 = arith.addi %4, %c8_i32_2 : i32
    %c1_i32 = arith.constant 1 : i32
    %6 = arith.subi %5, %c1_i32 : i32
    %7 = arith.cmpi sle, %3, %6 : i32
    %8 = arith.extui %7 : i1 to i32
    %c0_i32_3 = arith.constant 0 : i32
    %9 = arith.cmpi ne, %8, %c0_i32_3 : i32
    scf.if %9 {
      %c0 = arith.constant 0 : index
      %c0_6 = arith.constant 0 : index
      %c0_7 = arith.constant 0 : index
      %c0_8 = arith.constant 0 : index
      %c0_9 = arith.constant 0 : index
      %13 = vector.load %arg4[%c0, %c0_6, %c0_7, %c0_8, %c0_9] : memref<1x1x1x8x8xf32, #tpu.memory_space<vmem>>, vector<1x1x1x8x8xf32>
      %14 = vector.shape_cast %13 : vector<1x1x1x8x8xf32> to vector<8x8xf32>
      %c0_10 = arith.constant 0 : index
      %c0_11 = arith.constant 0 : index
      %15 = vector.load %arg7[%c0_10, %c0_11] : memref<8x4xf32, #tpu.memory_space<vmem>>, vector<8x4xf32>
      %c0_12 = arith.constant 0 : index
      %c0_13 = arith.constant 0 : index
      %16 = vector.load %arg8[%c0_12, %c0_13] : memref<8x4xf32, #tpu.memory_space<vmem>>, vector<8x4xf32>
      %17 = vector.extract_strided_slice %14 {offsets = [0, 0], sizes = [8, 4], strides = [1, 1]} : vector<8x8xf32> to vector<8x4xf32>
      %18 = vector.extract_strided_slice %14 {offsets = [0, 4], sizes = [8, 4], strides = [1, 1]} : vector<8x8xf32> to vector<8x4xf32>
      %19 = arith.mulf %17, %15 : vector<8x4xf32>
      %20 = arith.mulf %18, %16 : vector<8x4xf32>
      %21 = arith.subf %19, %20 : vector<8x4xf32>
      %22 = arith.mulf %18, %15 : vector<8x4xf32>
      %23 = arith.mulf %17, %16 : vector<8x4xf32>
      %24 = arith.addf %22, %23 : vector<8x4xf32>
      %25 = tpu.concatenate %21, %24 in 1 : vector<8x4xf32>, vector<8x4xf32> -> vector<8x8xf32>
      %c0_14 = arith.constant 0 : index
      %c0_15 = arith.constant 0 : index
      %c0_16 = arith.constant 0 : index
      %c0_17 = arith.constant 0 : index
      %c0_18 = arith.constant 0 : index
      %26 = vector.load %arg5[%c0_14, %c0_15, %c0_16, %c0_17, %c0_18] : memref<1x1x1x8x8xf32, #tpu.memory_space<vmem>>, vector<1x1x1x8x8xf32>
      %27 = vector.shape_cast %26 : vector<1x1x1x8x8xf32> to vector<8x8xf32>
      %c0_19 = arith.constant 0 : index
      %c0_20 = arith.constant 0 : index
      %28 = vector.load %arg9[%c0_19, %c0_20] : memref<8x4xf32, #tpu.memory_space<vmem>>, vector<8x4xf32>
      %c0_21 = arith.constant 0 : index
      %c0_22 = arith.constant 0 : index
      %29 = vector.load %arg10[%c0_21, %c0_22] : memref<8x4xf32, #tpu.memory_space<vmem>>, vector<8x4xf32>
      %30 = vector.extract_strided_slice %27 {offsets = [0, 0], sizes = [8, 4], strides = [1, 1]} : vector<8x8xf32> to vector<8x4xf32>
      %31 = vector.extract_strided_slice %27 {offsets = [0, 4], sizes = [8, 4], strides = [1, 1]} : vector<8x8xf32> to vector<8x4xf32>
      %32 = arith.mulf %30, %28 : vector<8x4xf32>
      %33 = arith.mulf %31, %29 : vector<8x4xf32>
      %34 = arith.subf %32, %33 : vector<8x4xf32>
      %35 = arith.mulf %31, %28 : vector<8x4xf32>
      %36 = arith.mulf %30, %29 : vector<8x4xf32>
      %37 = arith.addf %35, %36 : vector<8x4xf32>
      %38 = tpu.concatenate %34, %37 in 1 : vector<8x4xf32>, vector<8x4xf32> -> vector<8x8xf32>
      %cst = arith.constant dense<0.000000e+00> : vector<8x8xf32>
      %39 = tpu.matmul %25, %38, %cst {dimension_numbers = #tpu.dot_dimension_numbers<[1], [1], [0], [0], [0, 0, 1, 0], [], []>} : vector<8x8xf32>, vector<8x8xf32>, vector<8x8xf32> -> vector<8x8xf32>
      %c8_i32_23 = arith.constant 8 : i32
      %40 = arith.muli %arg2, %c8_i32_23 : i32
      %41 = tpu.iota {dimensions = array<i32: 0>} : vector<8x8xi32>
      %42 = vector.broadcast %40 : i32 to vector<8x8xi32>
      %43 = arith.addi %42, %41 : vector<8x8xi32>
      %c8_i32_24 = arith.constant 8 : i32
      %44 = arith.muli %arg3, %c8_i32_24 : i32
      %45 = tpu.iota {dimensions = array<i32: 1>} : vector<8x8xi32>
      %46 = vector.broadcast %44 : i32 to vector<8x8xi32>
      %47 = arith.addi %46, %45 : vector<8x8xi32>
      %48 = arith.cmpi sle, %47, %43 : vector<8x8xi32>
      %cst_25 = arith.constant 0xFF800000 : f32
      %49 = vector.broadcast %cst_25 : f32 to vector<8x8xf32>
      %50 = arith.select %48, %39, %49 : vector<8x8xi1>, vector<8x8xf32>
      %c0_26 = arith.constant 0 : index
      %c0_27 = arith.constant 0 : index
      %51 = vector.load %arg12[%c0_26, %c0_27] : memref<8x1xf32, #tpu.memory_space<vmem>>, vector<8x1xf32>
      %cst_28 = arith.constant dense<0xFF800000> : vector<8xf32>
      %52 = vector.multi_reduction <maximumf>, %50, %cst_28 [1] : vector<8x8xf32> to vector<8xf32>
      %53 = vector.shape_cast %52 : vector<8xf32> to vector<8x1xf32>
      %54 = arith.maximumf %51, %53 : vector<8x1xf32>
      %55 = arith.subf %51, %54 : vector<8x1xf32>
      %56 = math.exp %55 : vector<8x1xf32>
      %57 = vector.broadcast %54 : vector<8x1xf32> to vector<8x8xf32>
      %58 = arith.subf %50, %57 : vector<8x8xf32>
      %59 = math.exp %58 : vector<8x8xf32>
      %c0_29 = arith.constant 0 : index
      %c0_30 = arith.constant 0 : index
      %60 = vector.load %arg13[%c0_29, %c0_30] : memref<8x1xf32, #tpu.memory_space<vmem>>, vector<8x1xf32>
      %61 = arith.mulf %56, %60 : vector<8x1xf32>
      %cst_31 = arith.constant dense<0.000000e+00> : vector<8xf32>
      %62 = vector.multi_reduction <add>, %59, %cst_31 [1] : vector<8x8xf32> to vector<8xf32>
      %63 = vector.shape_cast %62 : vector<8xf32> to vector<8x1xf32>
      %64 = arith.addf %61, %63 : vector<8x1xf32>
      %c0_32 = arith.constant 0 : index
      %c0_33 = arith.constant 0 : index
      %65 = vector.load %arg13[%c0_32, %c0_33] : memref<8x1xf32, #tpu.memory_space<vmem>>, vector<8x1xf32>
      tpu.vector_store %arg13[%c0_32, %c0_33], %64 {strides = array<i32>} : memref<8x1xf32, #tpu.memory_space<vmem>>, vector<8x1xf32>,
      %c0_34 = arith.constant 0 : index
      %c0_35 = arith.constant 0 : index
      %66 = vector.load %arg14[%c0_34, %c0_35] : memref<8x8xf32, #tpu.memory_space<vmem>>, vector<8x8xf32>
      %67 = vector.broadcast %56 : vector<8x1xf32> to vector<8x8xf32>
      %68 = arith.mulf %67, %66 : vector<8x8xf32>
      %c0_36 = arith.constant 0 : index
      %c0_37 = arith.constant 0 : index
      %c0_38 = arith.constant 0 : index
      %c0_39 = arith.constant 0 : index
      %c0_40 = arith.constant 0 : index
      %69 = vector.load %arg6[%c0_36, %c0_37, %c0_38, %c0_39, %c0_40] : memref<1x1x1x8x8xf32, #tpu.memory_space<vmem>>, vector<1x1x1x8x8xf32>
      %70 = vector.shape_cast %69 : vector<1x1x1x8x8xf32> to vector<8x8xf32>
      %cst_41 = arith.constant dense<0.000000e+00> : vector<8x8xf32>
      %71 = tpu.matmul %59, %70, %cst_41 {dimension_numbers = #tpu.dot_dimension_numbers<[1], [0], [0], [1], [0, 0, 1, 1], [], []>} : vector<8x8xf32>, vector<8x8xf32>, vector<8x8xf32> -> vector<8x8xf32>
      %72 = arith.addf %68, %71 : vector<8x8xf32>
      %c0_42 = arith.constant 0 : index
      %c0_43 = arith.constant 0 : index
      %73 = vector.load %arg14[%c0_42, %c0_43] : memref<8x8xf32, #tpu.memory_space<vmem>>, vector<8x8xf32>
      tpu.vector_store %arg14[%c0_42, %c0_43], %72 {strides = array<i32>} : memref<8x8xf32, #tpu.memory_space<vmem>>, vector<8x8xf32>,
      %c0_44 = arith.constant 0 : index
      %c0_45 = arith.constant 0 : index
      %74 = vector.load %arg12[%c0_44, %c0_45] : memref<8x1xf32, #tpu.memory_space<vmem>>, vector<8x1xf32>
      tpu.vector_store %arg12[%c0_44, %c0_45], %54 {strides = array<i32>} : memref<8x1xf32, #tpu.memory_space<vmem>>, vector<8x1xf32>,
    } else {
    }
    %c0_i32_4 = arith.constant 0 : i32
    %10 = arith.cmpi eq, %arg3, %c0_i32_4 : i32
    %11 = arith.extui %10 : i1 to i32
    %c0_i32_5 = arith.constant 0 : i32
    %12 = arith.cmpi ne, %11, %c0_i32_5 : i32
    scf.if %12 {
      %c0 = arith.constant 0 : index
      %c0_6 = arith.constant 0 : index
      %13 = vector.load %arg14[%c0, %c0_6] : memref<8x8xf32, #tpu.memory_space<vmem>>, vector<8x8xf32>
      %c0_7 = arith.constant 0 : index
      %c0_8 = arith.constant 0 : index
      %14 = vector.load %arg13[%c0_7, %c0_8] : memref<8x1xf32, #tpu.memory_space<vmem>>, vector<8x1xf32>
      %15 = tpu.reciprocal %14 : vector<8x1xf32> -> vector<8x1xf32>
      %16 = vector.broadcast %15 : vector<8x1xf32> to vector<8x8xf32>
      %17 = arith.mulf %13, %16 : vector<8x8xf32>
      %c0_9 = arith.constant 0 : index
      %c0_10 = arith.constant 0 : index
      %c0_11 = arith.constant 0 : index
      %c0_12 = arith.constant 0 : index
      %18 = vector.load %arg11[%c0_9, %c0_10, %c0_11, %c0_12] : memref<1x1x8x8xf32, #tpu.memory_space<vmem>>, vector<1x1x8x8xf32>
      %19 = vector.shape_cast %18 : vector<1x1x8x8xf32> to vector<8x8xf32>
      %20 = vector.shape_cast %17 : vector<8x8xf32> to vector<1x1x8x8xf32>
      tpu.vector_store %arg11[%c0_9, %c0_10, %c0_11, %c0_12], %20 {strides = array<i32>} : memref<1x1x8x8xf32, #tpu.memory_space<vmem>>, vector<1x1x8x8xf32>,
    } else {
    }
    return
  }
  func.func @transform_0(%arg0: i32, %arg1: i32, %arg2: i32, %arg3: i32) -> (i32, i32, i32, i32, i32) {
    %c0_i32 = arith.constant 0 : i32
    %c0_i32_0 = arith.constant 0 : i32
    %c0_i32_1 = arith.constant 0 : i32
    return %c0_i32, %arg0, %arg1, %arg2, %c0_i32_0 : i32, i32, i32, i32, i32
  }
  func.func @transform_1(%arg0: i32, %arg1: i32, %arg2: i32, %arg3: i32) -> (i32, i32, i32, i32, i32) {
    %c1_i32 = arith.constant 1 : i32
    %c0_i32 = arith.constant 0 : i32
    %c0_i32_0 = arith.constant 0 : i32
    return %c1_i32, %arg0, %arg1, %arg3, %c0_i32 : i32, i32, i32, i32, i32
  }
  func.func @transform_2(%arg0: i32, %arg1: i32, %arg2: i32, %arg3: i32) -> (i32, i32, i32, i32, i32) {
    %c2_i32 = arith.constant 2 : i32
    %c0_i32 = arith.constant 0 : i32
    %c0_i32_0 = arith.constant 0 : i32
    return %c2_i32, %arg0, %arg1, %arg3, %c0_i32 : i32, i32, i32, i32, i32
  }
  func.func @transform_3(%arg0: i32, %arg1: i32, %arg2: i32, %arg3: i32) -> (i32, i32) {
    %c0_i32 = arith.constant 0 : i32
    %c0_i32_0 = arith.constant 0 : i32
    return %arg2, %c0_i32 : i32, i32
  }
  func.func @transform_4(%arg0: i32, %arg1: i32, %arg2: i32, %arg3: i32) -> (i32, i32) {
    %c0_i32 = arith.constant 0 : i32
    %c0_i32_0 = arith.constant 0 : i32
    return %arg2, %c0_i32 : i32, i32
  }
  func.func @transform_5(%arg0: i32, %arg1: i32, %arg2: i32, %arg3: i32) -> (i32, i32) {
    %c0_i32 = arith.constant 0 : i32
    %c0_i32_0 = arith.constant 0 : i32
    return %arg3, %c0_i32 : i32, i32
  }
  func.func @transform_6(%arg0: i32, %arg1: i32, %arg2: i32, %arg3: i32) -> (i32, i32) {
    %c0_i32 = arith.constant 0 : i32
    %c0_i32_0 = arith.constant 0 : i32
    return %arg3, %c0_i32 : i32, i32
  }
  func.func @transform_7(%arg0: i32, %arg1: i32, %arg2: i32, %arg3: i32) -> (i32, i32, i32, i32) {
    %c0_i32 = arith.constant 0 : i32
    %c0_i32_0 = arith.constant 0 : i32
    return %arg0, %arg1, %arg2, %c0_i32 : i32, i32, i32, i32
  }
}

</mosaic_0001>

<llo_original>
// kernel: multihead_self_attention.5
$region0: #{multihead_self_attention.5}
  #allocation0 [shape = 'u32[]', space=smem, size = 0x4, offset = 0x4, fixed_abs, tag = 'smem constant byte address 0x4 - core index']
  #allocation1 [shape = 'u32[144,128]{1,0:T(1,128)}', space=vmem, size = 0x12000, scoped, tag = 'internal scratch']
  #allocation2 [shape = 'f32[16,32]{1,0:T(8,128)}', space=vmem, size = 0x2000, scoped, tag = 'scratch operand']
  %s0 = inlined_call_operand.vmem [shape: f32[16,32], index: 0, kind: input, shape index: {}]
  %s1 = inlined_call_operand.vmem [shape: f32[32,32], index: 1, kind: input, shape index: {}]
  %s2 = inlined_call_operand.hbm [shape: f32[16,32], index: 2, kind: output, shape index: {}]
  %s3 = sld [smem:[#allocation0]]
  $region26: #{multihead_self_attention.5} parent=0
    _
  %s5 = ssub.s32 1, %s3
  %s6 = scalar_select 0, %s5, %s3
  $region1: #{multihead_self_attention.5} parent=0
    #allocation3 [shape = 'u8[8192]{0}', space=vmem, size = 0x2000, scoped, tag = 'output window, operand 0, single buffered']
    #allocation4 [shape = 's32[1]{0}', space=sflag, size = 0x4, scoped, tag = 'scoped memory for multihead_self_attention.5']
    %7 = vsyncpa [#allocation4], 0
    // Predicated region
    $region2: #{multihead_self_attention.5} parent=1 // pred_check
      _
    $region3: #{multihead_self_attention.5} parent=1 // pred_check_branch
      %9 = sbr.rel (0) target = $region5
    $region4: #{multihead_self_attention.5} parent=1 // pred_region
      _
    $region5: #{multihead_self_attention.5} parent=1 // pred_fallthru
      _
    // Predicated region
    $region6: #{multihead_self_attention.5} parent=1 // pred_check
      _
    $region7: #{multihead_self_attention.5} parent=1 // pred_check_branch
      %11 = sbr.rel (0) target = $region9
    $region8: #{multihead_self_attention.5} parent=1 // pred_region
      _
    $region9: #{multihead_self_attention.5} parent=1 // pred_fallthru
      _
    %p12 = scmp.eq.s32.totalorder 0, 0
    // Predicated region
    $region10: #{multihead_self_attention.5} parent=1 // pred_check
      %p13 = pneg %p12
    $region11: #{multihead_self_attention.5} parent=1 // pred_check_branch
      %15 = sbr.rel (%p13) target = $region13
    $region12: #{multihead_self_attention.5} parent=1 // pred_region
      %vm16 = vcmask 261120
      %17 = vst.msk [vmem:[#allocation2] sm:$0xff] %vm16, 0.0
      %18 = vst.msk [vmem:[#allocation2 + $0x8] sm:$0xff] %vm16, 0.0
    $region13: #{multihead_self_attention.5} parent=1 // pred_fallthru
      _
    %v19 = vld [vmem:[#allocation2] sm:$0xff]
    %v20 = vld [vmem:[#allocation2 + $0x8] sm:$0xff]
    %v21 = vld [vmem:[%s0] sm:$0xff]
    %v22 = vld [vmem:[%s0 + $0x8] sm:$0xff]
    %v23 = vld [vmem:[%s1] sm:$0xff]
    %v24 = vld [vmem:[%s1 + $0x8] sm:$0xff]
    %v25 = vld [vmem:[%s1 + $0x10] sm:$0xff]
    %v26 = vld [vmem:[%s1 + $0x18] sm:$0xff]
    %vm27 = vcmask 261120
    %v29 = vsel %vm27, %v21, 0
    %v32 = vsel %vm27, %v22, 0
    %34 = vmatprep.subr.mxu0 0.0
    %35 = vmatpush1.msra.mxu0 %v23
    %36 = vmatprep.subr.mxu0 0.0
    %37 = vmatpush1.msra.mxu0 %v24
    %38 = vmatprep.subr.mxu0 0.0
    %39 = vmatpush1.msra.mxu0 %v25
    %40 = vmatprep.subr.mxu0 0.0
    %41 = vmatpush1.msra.mxu0 %v26
    %42 = vmatprep.subr.mxu0 0.0
    %43 = vmatpush1.msra.mxu0 0.0
    %44 = vmatprep.subr.mxu0 0.0
    %45 = vmatpush1.msra.mxu0 0.0
    %46 = vmatprep.subr.mxu0 0.0
    %47 = vmatpush1.msra.mxu0 0.0
    %48 = vmatprep.subr.mxu0 0.0
    %49 = vmatpush1.msra.mxu0 0.0
    %50 = vmatprep.subr.mxu0 0.0
    %51 = vmatpush1.msra.mxu0 0.0
    %52 = vmatprep.subr.mxu0 0.0
    %53 = vmatpush1.msra.mxu0 0.0
    %54 = vmatprep.subr.mxu0 0.0
    %55 = vmatpush1.msra.mxu0 0.0
    %56 = vmatprep.subr.mxu0 0.0
    %57 = vmatpush1.msra.mxu0 0.0
    %58 = vmatprep.subr.mxu0 0.0
    %59 = vmatpush1.msra.mxu0 0.0
    %60 = vmatprep.subr.mxu0 0.0
    %61 = vmatpush1.msra.mxu0 0.0
    %62 = vmatprep.subr.mxu0 0.0
    %63 = vmatpush1.msra.mxu0 0.0
    %64 = vmatprep.subr.mxu0 0.0
    %65 = vmatpush1.msra.mxu0 0.0
    %66 = vmatprep.subr.mxu0 0.0
    %67 = vmatpush1.msra.mxu0 0.0
    %68 = vmatprep.subr.mxu0 0.0
    %69 = vmatpush1.msra.mxu0 0.0
    %70 = vmatprep.subr.mxu0 0.0
    %71 = vmatpush1.msra.mxu0 0.0
    %72 = vmatprep.subr.mxu0 0.0
    %73 = vmatpush1.msra.mxu0 0.0
    %74 = vmatprep.subr.mxu0 0.0
    %75 = vmatpush1.msra.mxu0 0.0
    %76 = vmatprep.subr.mxu0 0.0
    %77 = vmatpush1.msra.mxu0 0.0
    %78 = vmatprep.subr.mxu0 0.0
    %79 = vmatpush1.msra.mxu0 0.0
    %80 = vmatprep.subr.mxu0 0.0
    %81 = vmatpush1.msra.mxu0 0.0
    %82 = vmatprep.subr.mxu0 0.0
    %83 = vmatpush1.msra.mxu0 0.0
    %84 = vmatprep.subr.mxu0 0.0
    %85 = vmatpush1.msra.mxu0 0.0
    %86 = vmatprep.subr.mxu0 0.0
    %87 = vmatpush1.msra.mxu0 0.0
    %88 = vmatprep.subr.mxu0 0.0
    %89 = vmatpush1.msra.mxu0 0.0
    %90 = vmatprep.subr.mxu0 0.0
    %91 = vmatpush1.msra.mxu0 0.0
    %92 = vmatprep.subr.mxu0 0.0
    %93 = vmatpush1.msra.mxu0 0.0
    %94 = vmatprep.subr.mxu0 0.0
    %95 = vmatpush1.msra.mxu0 0.0
    %96 = vmatprep.subr.mxu0 0.0
    %97 = vmatpush1.msra.mxu0 0.0
    %98 = vmatprep.mubr.f32.mxu0 0.0
    %99 = vmatmul.mubr.f32.gmra.mrb[0].mxu0 %v29
    %v100 = vpop.f32.mrb[0].mxu0
    %v101 = vadd.f32 0.0, %v100
    %v102 = vpop.f32.mrb[0].mxu0
    %103 = vmatprep.mubr.f32.mxu0 0.0
    %104 = vmatmul.mubr.f32.gmra.mrb[0].mxu0 %v32
    %v105 = vpop.f32.mrb[0].mxu0
    %v106 = vadd.f32 0.0, %v105
    %v107 = vpop.f32.mrb[0].mxu0
    %108 = vdwg.mxu0
    %v109 = vadd.f32 %v19, %v101
    %v110 = vadd.f32 %v20, %v106
    %111 = vst.msk [vmem:[#allocation2] sm:$0xff] %vm27, %v109
    %112 = vst.msk [vmem:[#allocation2 + $0x8] sm:$0xff] %vm27, %v110
    // Predicated region
    $region14: #{multihead_self_attention.5} parent=1 // pred_check
      %p113 = pneg %p12
    $region15: #{multihead_self_attention.5} parent=1 // pred_check_branch
      %115 = sbr.rel (%p113) target = $region17
    $region16: #{multihead_self_attention.5} parent=1 // pred_region
      %v116 = vld [vmem:[#allocation2] sm:$0xff]
      %v117 = vld [vmem:[#allocation2 + $0x8] sm:$0xff]
      %118 = vst.msk [vmem:[#allocation3] sm:$0xff] %vm27, %v116
      %119 = vst.msk [vmem:[#allocation3 + $0x8] sm:$0xff] %vm27, %v117
    $region17: #{multihead_self_attention.5} parent=1 // pred_fallthru
      _
    // Predicated region
    $region18: #{multihead_self_attention.5} parent=1 // pred_check
      _
    $region19: #{multihead_self_attention.5} parent=1 // pred_check_branch
      %121 = sbr.rel (0) target = $region21
    $region20: #{multihead_self_attention.5} parent=1 // pred_region
      %s123 = ssub.s32 256, 256
      %124 = vsyncadd [#allocation4], %s123
      %s125 = sshll.u32 [#allocation3], 4
      %s126 = int_to_ptr.vmem [resolvable:$true] %s125
      %131 = dma.vmem_to_hbm [thread:$0]  %s126, 256, %s2, [#allocation4], 128, 128, 8
    $region21: #{multihead_self_attention.5} parent=1 // pred_fallthru
      _
    // Predicated region
    $region22: #{multihead_self_attention.5} parent=1 // pred_check
      _
    $region23: #{multihead_self_attention.5} parent=1 // pred_check_branch
      %133 = sbr.rel (0) target = $region25
    $region24: #{multihead_self_attention.5} parent=1 // pred_region
      %134 = dma.done [#allocation4], 256
    $region25: #{multihead_self_attention.5} parent=1 // pred_fallthru
      _
    %135 = vsyncpa [#allocation4], 1

// kernel: multihead_self_attention.3
$region0: #{multihead_self_attention.3}
  #allocation0 [shape = 'u32[]', space=smem, size = 0x4, offset = 0x4, fixed_abs, tag = 'smem constant byte address 0x4 - core index']
  #allocation1 [shape = 'u32[144,128]{1,0:T(1,128)}', space=vmem, size = 0x12000, scoped, tag = 'internal scratch']
  #allocation2 [shape = 'f32[16,96]{1,0:T(8,128)}', space=vmem, size = 0x2000, scoped, tag = 'scratch operand']
  %s0 = inlined_call_operand.vmem [shape: f32[16,32], index: 0, kind: input, shape index: {}]
  %s1 = inlined_call_operand.vmem [shape: f32[32,96], index: 1, kind: input, shape index: {}]
  %s2 = inlined_call_operand.vmem [shape: f32[16,96], index: 2, kind: output, shape index: {}]
  %s3 = sld [smem:[#allocation0]]
  $region26: #{multihead_self_attention.3} parent=0
    _
  %s5 = ssub.s32 1, %s3
  %s6 = scalar_select 0, %s5, %s3
  // Predicated region
  $region2: #{multihead_self_attention.3} parent=0 // pred_check
    _
  $region3: #{multihead_self_attention.3} parent=0 // pred_check_branch
    %8 = sbr.rel (0) target = $region5
  $region4: #{multihead_self_attention.3} parent=0 // pred_region
    _
  $region5: #{multihead_self_attention.3} parent=0 // pred_fallthru
    _
  // Predicated region
  $region6: #{multihead_self_attention.3} parent=0 // pred_check
    _
  $region7: #{multihead_self_attention.3} parent=0 // pred_check_branch
    %10 = sbr.rel (0) target = $region9
  $region8: #{multihead_self_attention.3} parent=0 // pred_region
    _
  $region9: #{multihead_self_attention.3} parent=0 // pred_fallthru
    _
  %p11 = scmp.eq.s32.totalorder 0, 0
  // Predicated region
  $region10: #{multihead_self_attention.3} parent=0 // pred_check
    %p12 = pneg %p11
  $region11: #{multihead_self_attention.3} parent=0 // pred_check_branch
    %14 = sbr.rel (%p12) target = $region13
  $region12: #{multihead_self_attention.3} parent=0 // pred_region
    %vm15 = vcmask 785408
    %16 = vst.msk [vmem:[#allocation2] sm:$0xff] %vm15, 0.0
    %17 = vst.msk [vmem:[#allocation2 + $0x8] sm:$0xff] %vm15, 0.0
  $region13: #{multihead_self_attention.3} parent=0 // pred_fallthru
    _
  %v18 = vld [vmem:[#allocation2] sm:$0xff]
  %v19 = vld [vmem:[#allocation2 + $0x8] sm:$0xff]
  %v20 = vld [vmem:[%s0] sm:$0xff]
  %v21 = vld [vmem:[%s0 + $0x8] sm:$0xff]
  %v22 = vld [vmem:[%s1] sm:$0xff]
  %v23 = vld [vmem:[%s1 + $0x8] sm:$0xff]
  %v24 = vld [vmem:[%s1 + $0x10] sm:$0xff]
  %v25 = vld [vmem:[%s1 + $0x18] sm:$0xff]
  %vm26 = vcmask 261120
  %v28 = vsel %vm26, %v20, 0
  %v31 = vsel %vm26, %v21, 0
  %33 = vmatprep.subr.mxu0 0.0
  %34 = vmatpush1.msra.mxu0 %v22
  %35 = vmatprep.subr.mxu0 0.0
  %36 = vmatpush1.msra.mxu0 %v23
  %37 = vmatprep.subr.mxu0 0.0
  %38 = vmatpush1.msra.mxu0 %v24
  %39 = vmatprep.subr.mxu0 0.0
  %40 = vmatpush1.msra.mxu0 %v25
  %41 = vmatprep.subr.mxu0 0.0
  %42 = vmatpush1.msra.mxu0 0.0
  %43 = vmatprep.subr.mxu0 0.0
  %44 = vmatpush1.msra.mxu0 0.0
  %45 = vmatprep.subr.mxu0 0.0
  %46 = vmatpush1.msra.mxu0 0.0
  %47 = vmatprep.subr.mxu0 0.0
  %48 = vmatpush1.msra.mxu0 0.0
  %49 = vmatprep.subr.mxu0 0.0
  %50 = vmatpush1.msra.mxu0 0.0
  %51 = vmatprep.subr.mxu0 0.0
  %52 = vmatpush1.msra.mxu0 0.0
  %53 = vmatprep.subr.mxu0 0.0
  %54 = vmatpush1.msra.mxu0 0.0
  %55 = vmatprep.subr.mxu0 0.0
  %56 = vmatpush1.msra.mxu0 0.0
  %57 = vmatprep.subr.mxu0 0.0
  %58 = vmatpush1.msra.mxu0 0.0
  %59 = vmatprep.subr.mxu0 0.0
  %60 = vmatpush1.msra.mxu0 0.0
  %61 = vmatprep.subr.mxu0 0.0
  %62 = vmatpush1.msra.mxu0 0.0
  %63 = vmatprep.subr.mxu0 0.0
  %64 = vmatpush1.msra.mxu0 0.0
  %65 = vmatprep.subr.mxu0 0.0
  %66 = vmatpush1.msra.mxu0 0.0
  %67 = vmatprep.subr.mxu0 0.0
  %68 = vmatpush1.msra.mxu0 0.0
  %69 = vmatprep.subr.mxu0 0.0
  %70 = vmatpush1.msra.mxu0 0.0
  %71 = vmatprep.subr.mxu0 0.0
  %72 = vmatpush1.msra.mxu0 0.0
  %73 = vmatprep.subr.mxu0 0.0
  %74 = vmatpush1.msra.mxu0 0.0
  %75 = vmatprep.subr.mxu0 0.0
  %76 = vmatpush1.msra.mxu0 0.0
  %77 = vmatprep.subr.mxu0 0.0
  %78 = vmatpush1.msra.mxu0 0.0
  %79 = vmatprep.subr.mxu0 0.0
  %80 = vmatpush1.msra.mxu0 0.0
  %81 = vmatprep.subr.mxu0 0.0
  %82 = vmatpush1.msra.mxu0 0.0
  %83 = vmatprep.subr.mxu0 0.0
  %84 = vmatpush1.msra.mxu0 0.0
  %85 = vmatprep.subr.mxu0 0.0
  %86 = vmatpush1.msra.mxu0 0.0
  %87 = vmatprep.subr.mxu0 0.0
  %88 = vmatpush1.msra.mxu0 0.0
  %89 = vmatprep.subr.mxu0 0.0
  %90 = vmatpush1.msra.mxu0 0.0
  %91 = vmatprep.subr.mxu0 0.0
  %92 = vmatpush1.msra.mxu0 0.0
  %93 = vmatprep.subr.mxu0 0.0
  %94 = vmatpush1.msra.mxu0 0.0
  %95 = vmatprep.subr.mxu0 0.0
  %96 = vmatpush1.msra.mxu0 0.0
  %97 = vmatprep.mubr.f32.mxu0 0.0
  %98 = vmatmul.mubr.f32.gmra.mrb[0].mxu0 %v28
  %v99 = vpop.f32.mrb[0].mxu0
  %v100 = vadd.f32 0.0, %v99
  %v101 = vpop.f32.mrb[0].mxu0
  %102 = vmatprep.mubr.f32.mxu0 0.0
  %103 = vmatmul.mubr.f32.gmra.mrb[0].mxu0 %v31
  %v104 = vpop.f32.mrb[0].mxu0
  %v105 = vadd.f32 0.0, %v104
  %v106 = vpop.f32.mrb[0].mxu0
  %107 = vdwg.mxu0
  %v108 = vadd.f32 %v18, %v100
  %v109 = vadd.f32 %v19, %v105
  %vm110 = vcmask 785408
  %111 = vst.msk [vmem:[#allocation2] sm:$0xff] %vm110, %v108
  %112 = vst.msk [vmem:[#allocation2 + $0x8] sm:$0xff] %vm110, %v109
  // Predicated region
  $region14: #{multihead_self_attention.3} parent=0 // pred_check
    %p113 = pneg %p11
  $region15: #{multihead_self_attention.3} parent=0 // pred_check_branch
    %115 = sbr.rel (%p113) target = $region17
  $region16: #{multihead_self_attention.3} parent=0 // pred_region
    %v116 = vld [vmem:[#allocation2] sm:$0xff]
    %v117 = vld [vmem:[#allocation2 + $0x8] sm:$0xff]
    %118 = vst.msk [vmem:[%s2] sm:$0xff] %vm110, %v116
    %119 = vst.msk [vmem:[%s2 + $0x8] sm:$0xff] %vm110, %v117
  $region17: #{multihead_self_attention.3} parent=0 // pred_fallthru
    _
  // Predicated region
  $region18: #{multihead_self_attention.3} parent=0 // pred_check
    _
  $region19: #{multihead_self_attention.3} parent=0 // pred_check_branch
    %121 = sbr.rel (0) target = $region21
  $region20: #{multihead_self_attention.3} parent=0 // pred_region
    _
  $region21: #{multihead_self_attention.3} parent=0 // pred_fallthru
    _
  // Predicated region
  $region22: #{multihead_self_attention.3} parent=0 // pred_check
    _
  $region23: #{multihead_self_attention.3} parent=0 // pred_check_branch
    %123 = sbr.rel (0) target = $region25
  $region24: #{multihead_self_attention.3} parent=0 // pred_region
    _
  $region25: #{multihead_self_attention.3} parent=0 // pred_fallthru
    _

// kernel: multihead_self_attention.4
$region0: #{multihead_self_attention.4}
  #allocation0 [shape = 'u32[]', space=smem, size = 0x4, offset = 0x4, fixed_abs, tag = 'smem constant byte address 0x4 - core index']
  #allocation1 [shape = 'u32[144,128]{1,0:T(1,128)}', space=vmem, size = 0x12000, scoped, tag = 'internal scratch']
  #allocation2 [shape = 'f32[8,1]{1,0:T(8,128)}', space=vmem, size = 0x1000, scoped, tag = 'scratch operand']
  #allocation3 [shape = 'f32[8,1]{1,0:T(8,128)}', space=vmem, size = 0x1000, scoped, tag = 'scratch operand']
  #allocation4 [shape = 'f32[8,8]{1,0:T(8,128)}', space=vmem, size = 0x1000, scoped, tag = 'scratch operand']
  %s0 = inlined_call_operand.vmem [shape: f32[3,2,4,8,8], index: 0, kind: input, shape index: {}, may-alias: {0,1,2}]
  %s1 = inlined_call_operand.vmem [shape: f32[3,2,4,8,8], index: 1, kind: input, shape index: {}, may-alias: {0,1,2}]
  %s2 = inlined_call_operand.vmem [shape: f32[3,2,4,8,8], index: 2, kind: input, shape index: {}, may-alias: {0,1,2}]
  %s3 = inlined_call_operand.vmem [shape: f32[8,4], index: 3, kind: input, shape index: {}]
  %s4 = inlined_call_operand.vmem [shape: f32[8,4], index: 4, kind: input, shape index: {}]
  %s5 = inlined_call_operand.vmem [shape: f32[8,4], index: 5, kind: input, shape index: {}]
  %s6 = inlined_call_operand.vmem [shape: f32[8,4], index: 6, kind: input, shape index: {}]
  %s7 = inlined_call_operand.vmem [shape: f32[2,4,8,8], index: 7, kind: output, shape index: {}]
  %s8 = sld [smem:[#allocation0]]
  $region73: #{multihead_self_attention.4} parent=0
    _
  %s10 = ssub.s32 1, %s8
  %s11 = scalar_select 0, %s10, %s8
  loop: start=0, step=1, limit=10
  $region2: #{multihead_self_attention.4} parent=0 // loop_pre_header
    _
  $region3: #{multihead_self_attention.4} parent=0 // loop_header
    %s13 = sphi 0, %s17
    %p14 = scmp.ge.s32.totalorder %s13, 10
    %s20 = sphi 0, %s46
    %s21 = sphi 0, %s42
    %s22 = sphi 0, %s38
    %s23 = sphi 0, %s34
    %s24 = sphi 0, %s20
    %s25 = sphi 0, %s21
    %s26 = sphi 0, %s22
    %s27 = sphi 0, %s23
    %s28 = sphi 0, %s24
    %s29 = sphi 0, %s25
    %s30 = sphi 0, %s26
    %s31 = sphi 0, %s27
    %s53 = sphi 0, %s55
    %s56 = sphi 0, %s53
    %s57 = sphi 0, %s56
    %s73 = sphi 0, %s57
    %s83 = sphi 0, %s85
    %s86 = sphi 0, %s83
    %s87 = sphi 0, %s86
    %s103 = sphi 0, %s87
    %s113 = sphi 0, %s115
    %s116 = sphi 0, %s113
    %s117 = sphi 0, %s116
    %s133 = sphi 0, %s117
    %s139 = sphi 0, %s141
    %s142 = sphi 0, %s139
    %s143 = sphi 0, %s142
    %s159 = sphi 0, %s143
    %s165 = sphi 0, %s167
    %s168 = sphi 0, %s165
    %s169 = sphi 0, %s168
    %s185 = sphi 0, %s169
    %s191 = sphi 0, %s193
    %s194 = sphi 0, %s191
    %s195 = sphi 0, %s194
    %s211 = sphi 0, %s195
    %s217 = sphi 0, %s219
    %s220 = sphi 0, %s217
    %s221 = sphi 0, %s220
    %s237 = sphi 0, %s221
    %s247 = sphi 0, %s249
    %s250 = sphi 0, %s247
    %s251 = sphi 0, %s250
    %s267 = sphi 0, %s251
  $region4: #{multihead_self_attention.4} parent=0 // loop_header_branch
    %16 = sbr.rel (%p14) target = $region8
  $region5: #{multihead_self_attention.4} parent=0 // loop_body
    %s18 = ssub.s32 %s13, 1
    %s19 = ssub.s32 %s13, 2
    %s32 = sadd.s32 1, %s23
    %p33 = scmp.ge.s32.totalorder %s32, 1
    %s34 = scalar_select %p33, 0, %s32
    %s35 = sadd.s32 1, %s22
    %s36 = scalar_select %p33, %s35, %s22
    %p37 = scmp.ge.s32.totalorder %s36, 1
    %s38 = scalar_select %p37, 0, %s36
    %s39 = sadd.s32 1, %s21
    %s40 = scalar_select %p37, %s39, %s21
    %p41 = scmp.ge.s32.totalorder %s40, 4
    %s42 = scalar_select %p41, 0, %s40
    %s43 = sadd.s32 1, %s20
    %s44 = scalar_select %p41, %s43, %s20
    %p45 = scmp.ge.s32.totalorder %s44, 2
    %s46 = scalar_select %p45, 0, %s44
    %s47 = ssub.s32 %s20, %s46
    %s48 = ssub.s32 %s21, %s42
    %s49 = sor.u32 %s47, %s48
    %s50 = ssub.s32 %s22, %s38
    %s51 = sor.u32 %s49, %s50
    %p52 = scmp.eq.s32.totalorder %s51, 0
    %s54 = sadd.s32 %s53, 1
    %s55 = scalar_select %p52, %s53, %s54
    %p58 = pneg %p52
    %p59 = scmp.eq.s32.totalorder %s13, 7
    %p60 = por %p58, %p59
    %p61 = scmp.ne.s32.totalorder %s53, %s56
    %p62 = scmp.eq.s32.totalorder %s13, 0
    %p63 = por %p61, %p62
    %p64 = scmp.ne.s32.totalorder %s53, %s56
    %p65 = scmp.eq.s32.totalorder %s18, 7
    %p66 = por %p64, %p65
    %p67 = scmp.ne.s32.totalorder %s56, %s57
    %p68 = scmp.eq.s32.totalorder %s18, 0
    %p69 = por %p67, %p68
    %p70 = scmp.ne.s32.totalorder %s56, %s57
    %p71 = scmp.eq.s32.totalorder %s19, 7
    %p72 = por %p70, %p71
    %p74 = scmp.ne.s32.totalorder %s57, %s73
    %p75 = scmp.eq.s32.totalorder %s19, 0
    %p76 = por %p74, %p75
    %s77 = ssub.s32 %s20, %s46
    %s78 = ssub.s32 %s21, %s42
    %s79 = sor.u32 %s77, %s78
    %s80 = ssub.s32 %s23, %s34
    %s81 = sor.u32 %s79, %s80
    %p82 = scmp.eq.s32.totalorder %s81, 0
    %s84 = sadd.s32 %s83, 1
    %s85 = scalar_select %p82, %s83, %s84
    %p88 = pneg %p82
    %p89 = scmp.eq.s32.totalorder %s13, 7
    %p90 = por %p88, %p89
    %p91 = scmp.ne.s32.totalorder %s83, %s86
    %p92 = scmp.eq.s32.totalorder %s13, 0
    %p93 = por %p91, %p92
    %p94 = scmp.ne.s32.totalorder %s83, %s86
    %p95 = scmp.eq.s32.totalorder %s18, 7
    %p96 = por %p94, %p95
    %p97 = scmp.ne.s32.totalorder %s86, %s87
    %p98 = scmp.eq.s32.totalorder %s18, 0
    %p99 = por %p97, %p98
    %p100 = scmp.ne.s32.totalorder %s86, %s87
    %p101 = scmp.eq.s32.totalorder %s19, 7
    %p102 = por %p100, %p101
    %p104 = scmp.ne.s32.totalorder %s87, %s103
    %p105 = scmp.eq.s32.totalorder %s19, 0
    %p106 = por %p104, %p105
    %s107 = ssub.s32 %s20, %s46
    %s108 = ssub.s32 %s21, %s42
    %s109 = sor.u32 %s107, %s108
    %s110 = ssub.s32 %s23, %s34
    %s111 = sor.u32 %s109, %s110
    %p112 = scmp.eq.s32.totalorder %s111, 0
    %s114 = sadd.s32 %s113, 1
    %s115 = scalar_select %p112, %s113, %s114
    %p118 = pneg %p112
    %p119 = scmp.eq.s32.totalorder %s13, 7
    %p120 = por %p118, %p119
    %p121 = scmp.ne.s32.totalorder %s113, %s116
    %p122 = scmp.eq.s32.totalorder %s13, 0
    %p123 = por %p121, %p122
    %p124 = scmp.ne.s32.totalorder %s113, %s116
    %p125 = scmp.eq.s32.totalorder %s18, 7
    %p126 = por %p124, %p125
    %p127 = scmp.ne.s32.totalorder %s116, %s117
    %p128 = scmp.eq.s32.totalorder %s18, 0
    %p129 = por %p127, %p128
    %p130 = scmp.ne.s32.totalorder %s116, %s117
    %p131 = scmp.eq.s32.totalorder %s19, 7
    %p132 = por %p130, %p131
    %p134 = scmp.ne.s32.totalorder %s117, %s133
    %p135 = scmp.eq.s32.totalorder %s19, 0
    %p136 = por %p134, %p135
    %s137 = ssub.s32 %s22, %s38
    %p138 = scmp.eq.s32.totalorder %s137, 0
    %s140 = sadd.s32 %s139, 1
    %s141 = scalar_select %p138, %s139, %s140
    %p144 = pneg %p138
    %p145 = scmp.eq.s32.totalorder %s13, 7
    %p146 = por %p144, %p145
    %p147 = scmp.ne.s32.totalorder %s139, %s142
    %p148 = scmp.eq.s32.totalorder %s13, 0
    %p149 = por %p147, %p148
    %p150 = scmp.ne.s32.totalorder %s139, %s142
    %p151 = scmp.eq.s32.totalorder %s18, 7
    %p152 = por %p150, %p151
    %p153 = scmp.ne.s32.totalorder %s142, %s143
    %p154 = scmp.eq.s32.totalorder %s18, 0
    %p155 = por %p153, %p154
    %p156 = scmp.ne.s32.totalorder %s142, %s143
    %p157 = scmp.eq.s32.totalorder %s19, 7
    %p158 = por %p156, %p157
    %p160 = scmp.ne.s32.totalorder %s143, %s159
    %p161 = scmp.eq.s32.totalorder %s19, 0
    %p162 = por %p160, %p161
    %s163 = ssub.s32 %s22, %s38
    %p164 = scmp.eq.s32.totalorder %s163, 0
    %s166 = sadd.s32 %s165, 1
    %s167 = scalar_select %p164, %s165, %s166
    %p170 = pneg %p164
    %p171 = scmp.eq.s32.totalorder %s13, 7
    %p172 = por %p170, %p171
    %p173 = scmp.ne.s32.totalorder %s165, %s168
    %p174 = scmp.eq.s32.totalorder %s13, 0
    %p175 = por %p173, %p174
    %p176 = scmp.ne.s32.totalorder %s165, %s168
    %p177 = scmp.eq.s32.totalorder %s18, 7
    %p178 = por %p176, %p177
    %p179 = scmp.ne.s32.totalorder %s168, %s169
    %p180 = scmp.eq.s32.totalorder %s18, 0
    %p181 = por %p179, %p180
    %p182 = scmp.ne.s32.totalorder %s168, %s169
    %p183 = scmp.eq.s32.totalorder %s19, 7
    %p184 = por %p182, %p183
    %p186 = scmp.ne.s32.totalorder %s169, %s185
    %p187 = scmp.eq.s32.totalorder %s19, 0
    %p188 = por %p186, %p187
    %s189 = ssub.s32 %s23, %s34
    %p190 = scmp.eq.s32.totalorder %s189, 0
    %s192 = sadd.s32 %s191, 1
    %s193 = scalar_select %p190, %s191, %s192
    %p196 = pneg %p190
    %p197 = scmp.eq.s32.totalorder %s13, 7
    %p198 = por %p196, %p197
    %p199 = scmp.ne.s32.totalorder %s191, %s194
    %p200 = scmp.eq.s32.totalorder %s13, 0
    %p201 = por %p199, %p200
    %p202 = scmp.ne.s32.totalorder %s191, %s194
    %p203 = scmp.eq.s32.totalorder %s18, 7
    %p204 = por %p202, %p203
    %p205 = scmp.ne.s32.totalorder %s194, %s195
    %p206 = scmp.eq.s32.totalorder %s18, 0
    %p207 = por %p205, %p206
    %p208 = scmp.ne.s32.totalorder %s194, %s195
    %p209 = scmp.eq.s32.totalorder %s19, 7
    %p210 = por %p208, %p209
    %p212 = scmp.ne.s32.totalorder %s195, %s211
    %p213 = scmp.eq.s32.totalorder %s19, 0
    %p214 = por %p212, %p213
    %s215 = ssub.s32 %s23, %s34
    %p216 = scmp.eq.s32.totalorder %s215, 0
    %s218 = sadd.s32 %s217, 1
    %s219 = scalar_select %p216, %s217, %s218
    %p222 = pneg %p216
    %p223 = scmp.eq.s32.totalorder %s13, 7
    %p224 = por %p222, %p223
    %p225 = scmp.ne.s32.totalorder %s217, %s220
    %p226 = scmp.eq.s32.totalorder %s13, 0
    %p227 = por %p225, %p226
    %p228 = scmp.ne.s32.totalorder %s217, %s220
    %p229 = scmp.eq.s32.totalorder %s18, 7
    %p230 = por %p228, %p229
    %p231 = scmp.ne.s32.totalorder %s220, %s221
    %p232 = scmp.eq.s32.totalorder %s18, 0
    %p233 = por %p231, %p232
    %p234 = scmp.ne.s32.totalorder %s220, %s221
    %p235 = scmp.eq.s32.totalorder %s19, 7
    %p236 = por %p234, %p235
    %p238 = scmp.ne.s32.totalorder %s221, %s237
    %p239 = scmp.eq.s32.totalorder %s19, 0
    %p240 = por %p238, %p239
    %s241 = ssub.s32 %s20, %s46
    %s242 = ssub.s32 %s21, %s42
    %s243 = sor.u32 %s241, %s242
    %s244 = ssub.s32 %s22, %s38
    %s245 = sor.u32 %s243, %s244
    %p246 = scmp.eq.s32.totalorder %s245, 0
    %s248 = sadd.s32 %s247, 1
    %s249 = scalar_select %p246, %s247, %s248
    %p252 = pneg %p246
    %p253 = scmp.eq.s32.totalorder %s13, 7
    %p254 = por %p252, %p253
    %p255 = scmp.ne.s32.totalorder %s247, %s250
    %p256 = scmp.eq.s32.totalorder %s13, 0
    %p257 = por %p255, %p256
    %p258 = scmp.ne.s32.totalorder %s247, %s250
    %p259 = scmp.eq.s32.totalorder %s18, 7
    %p260 = por %p258, %p259
    %p261 = scmp.ne.s32.totalorder %s250, %s251
    %p262 = scmp.eq.s32.totalorder %s18, 0
    %p263 = por %p261, %p262
    %p264 = scmp.ne.s32.totalorder %s250, %s251
    %p265 = scmp.eq.s32.totalorder %s19, 7
    %p266 = por %p264, %p265
    %p268 = scmp.ne.s32.totalorder %s251, %s267
    %p269 = scmp.eq.s32.totalorder %s19, 0
    %p270 = por %p268, %p269
    %p271 = scmp.le.s32.totalorder 1, %s13
    %p272 = scmp.lt.s32.totalorder %s13, 9
    %p273 = pnand %p271, %p272
    %p274 = pneg %p273
    // Predicated region
    $region9: #{multihead_self_attention.4} parent=5 // pred_check
      _
    $region10: #{multihead_self_attention.4} parent=5 // pred_check_branch
      %276 = sbr.rel (%p273) target = $region12
    $region11: #{multihead_self_attention.4} parent=5 // pred_region
      %s277 = ssub.s32 %s13, 1
      // Predicated region
      $region13: #{multihead_self_attention.4} parent=11 // pred_check
        %p278 = pneg %p155
      $region14: #{multihead_self_attention.4} parent=11 // pred_check_branch
        %280 = sbr.rel (%p278) target = $region16
      $region15: #{multihead_self_attention.4} parent=11 // pred_region
        %p281 = scmp.lt.s32.totalorder %s26, 0
        %s282 = scalar_select %p281, %s26, 0
        %s283 = smul.addr %s282, 8
        %s284 = scalar_lea.vmem %s3, %s283
      $region16: #{multihead_self_attention.4} parent=11 // pred_fallthru
        _
      // Predicated region
      $region17: #{multihead_self_attention.4} parent=11 // pred_check
        %p285 = pneg %p181
      $region18: #{multihead_self_attention.4} parent=11 // pred_check_branch
        %287 = sbr.rel (%p285) target = $region20
      $region19: #{multihead_self_attention.4} parent=11 // pred_region
        %p288 = scmp.lt.s32.totalorder %s26, 0
        %s289 = scalar_select %p288, %s26, 0
        %s290 = smul.addr %s289, 8
        %s291 = scalar_lea.vmem %s4, %s290
      $region20: #{multihead_self_attention.4} parent=11 // pred_fallthru
        _
      // Predicated region
      $region21: #{multihead_self_attention.4} parent=11 // pred_check
        %p292 = pneg %p207
      $region22: #{multihead_self_attention.4} parent=11 // pred_check_branch
        %294 = sbr.rel (%p292) target = $region24
      $region23: #{multihead_self_attention.4} parent=11 // pred_region
        %p295 = scmp.lt.s32.totalorder %s27, 0
        %s296 = scalar_select %p295, %s27, 0
        %s297 = smul.addr %s296, 8
        %s298 = scalar_lea.vmem %s5, %s297
      $region24: #{multihead_self_attention.4} parent=11 // pred_fallthru
        _
      // Predicated region
      $region25: #{multihead_self_attention.4} parent=11 // pred_check
        %p299 = pneg %p233
      $region26: #{multihead_self_attention.4} parent=11 // pred_check_branch
        %301 = sbr.rel (%p299) target = $region28
      $region27: #{multihead_self_attention.4} parent=11 // pred_region
        %p302 = scmp.lt.s32.totalorder %s27, 0
        %s303 = scalar_select %p302, %s27, 0
        %s304 = smul.addr %s303, 8
        %s305 = scalar_lea.vmem %s6, %s304
      $region28: #{multihead_self_attention.4} parent=11 // pred_fallthru
        _
    $region12: #{multihead_self_attention.4} parent=5 // pred_fallthru
      _
    %p306 = scmp.lt.s32.totalorder %s13, 8
    // Predicated region
    $region29: #{multihead_self_attention.4} parent=5 // pred_check
      %p307 = pneg %p306
    $region30: #{multihead_self_attention.4} parent=5 // pred_check_branch
      %309 = sbr.rel (%p307) target = $region32
    $region31: #{multihead_self_attention.4} parent=5 // pred_region
      // Predicated region
      $region33: #{multihead_self_attention.4} parent=31 // pred_check
        %p310 = pneg %p63
      $region34: #{multihead_self_attention.4} parent=31 // pred_check_branch
        %312 = sbr.rel (%p310) target = $region36
      $region35: #{multihead_self_attention.4} parent=31 // pred_region
        %p313 = scmp.lt.s32.totalorder %s20, 1
        %s314 = scalar_select %p313, %s20, 1
        %p315 = scmp.lt.s32.totalorder %s21, 3
        %s316 = scalar_select %p315, %s21, 3
        %p317 = scmp.lt.s32.totalorder %s22, 0
        %s318 = scalar_select %p317, %s22, 0
        %s319 = sadd.s32 %s318, %s316
        %s320 = smul.addr %s314, 4
        %s321 = sadd.s32 %s319, %s320
        %s322 = smul.addr %s321, 8
        %s323 = scalar_lea.vmem %s0, %s322
      $region36: #{multihead_self_attention.4} parent=31 // pred_fallthru
        _
      // Predicated region
      $region37: #{multihead_self_attention.4} parent=31 // pred_check
        %p324 = pneg %p93
      $region38: #{multihead_self_attention.4} parent=31 // pred_check_branch
        %326 = sbr.rel (%p324) target = $region40
      $region39: #{multihead_self_attention.4} parent=31 // pred_region
        %p327 = scmp.lt.s32.totalorder %s20, 1
        %s328 = scalar_select %p327, %s20, 1
        %p329 = scmp.lt.s32.totalorder %s21, 3
        %s330 = scalar_select %p329, %s21, 3
        %p331 = scmp.lt.s32.totalorder %s23, 0
        %s332 = scalar_select %p331, %s23, 0
        %s333 = sadd.s32 %s332, %s330
        %s334 = smul.addr %s328, 4
        %s335 = sadd.s32 %s333, %s334
        %s336 = sadd.s32 %s335, 8
        %s337 = smul.addr %s336, 8
        %s338 = scalar_lea.vmem %s1, %s337
      $region40: #{multihead_self_attention.4} parent=31 // pred_fallthru
        _
      // Predicated region
      $region41: #{multihead_self_attention.4} parent=31 // pred_check
        %p339 = pneg %p123
      $region42: #{multihead_self_attention.4} parent=31 // pred_check_branch
        %341 = sbr.rel (%p339) target = $region44
      $region43: #{multihead_self_attention.4} parent=31 // pred_region
        %p342 = scmp.lt.s32.totalorder %s20, 1
        %s343 = scalar_select %p342, %s20, 1
        %p344 = scmp.lt.s32.totalorder %s21, 3
        %s345 = scalar_select %p344, %s21, 3
        %p346 = scmp.lt.s32.totalorder %s23, 0
        %s347 = scalar_select %p346, %s23, 0
        %s348 = sadd.s32 %s347, %s345
        %s349 = smul.addr %s343, 4
        %s350 = sadd.s32 %s348, %s349
        %s351 = sadd.s32 %s350, 16
        %s352 = smul.addr %s351, 8
        %s353 = scalar_lea.vmem %s2, %s352
      $region44: #{multihead_self_attention.4} parent=31 // pred_fallthru
        _
    $region32: #{multihead_self_attention.4} parent=5 // pred_fallthru
      _
    %p354 = scmp.le.s32.totalorder 1, %s13
    %p355 = scmp.lt.s32.totalorder %s13, 9
    %p356 = pnand %p354, %p355
    %p357 = pneg %p356
    // Predicated region
    $region45: #{multihead_self_attention.4} parent=5 // pred_check
      _
    $region46: #{multihead_self_attention.4} parent=5 // pred_check_branch
      %359 = sbr.rel (%p356) target = $region48
    $region47: #{multihead_self_attention.4} parent=5 // pred_region
      %s360 = ssub.s32 %s13, 1
      %p361 = scmp.lt.s32.totalorder %s24, 1
      %s362 = scalar_select %p361, %s24, 1
      %p363 = scmp.lt.s32.totalorder %s25, 3
      %s364 = scalar_select %p363, %s25, 3
      %p365 = scmp.lt.s32.totalorder %s26, 0
      %s366 = scalar_select %p365, %s26, 0
      %s367 = sadd.s32 %s366, %s364
      %s368 = smul.addr %s362, 4
      %s369 = sadd.s32 %s367, %s368
      %s370 = smul.addr %s369, 8
      %s371 = scalar_lea.vmem %s0, %s370
      %p372 = pneg %p69
      %p373 = pneg %p66
      %p374 = scmp.lt.s32.totalorder %s24, 1
      %s375 = scalar_select %p374, %s24, 1
      %p376 = scmp.lt.s32.totalorder %s25, 3
      %s377 = scalar_select %p376, %s25, 3
      %p378 = scmp.lt.s32.totalorder %s27, 0
      %s379 = scalar_select %p378, %s27, 0
      %s380 = sadd.s32 %s379, %s377
      %s381 = smul.addr %s375, 4
      %s382 = sadd.s32 %s380, %s381
      %s383 = sadd.s32 %s382, 8
      %s384 = smul.addr %s383, 8
      %s385 = scalar_lea.vmem %s1, %s384
      %p386 = pneg %p99
      %p387 = pneg %p96
      %p388 = scmp.lt.s32.totalorder %s24, 1
      %s389 = scalar_select %p388, %s24, 1
      %p390 = scmp.lt.s32.totalorder %s25, 3
      %s391 = scalar_select %p390, %s25, 3
      %p392 = scmp.lt.s32.totalorder %s27, 0
      %s393 = scalar_select %p392, %s27, 0
      %s394 = sadd.s32 %s393, %s391
      %s395 = smul.addr %s389, 4
      %s396 = sadd.s32 %s394, %s395
      %s397 = sadd.s32 %s396, 16
      %s398 = smul.addr %s397, 8
      %s399 = scalar_lea.vmem %s2, %s398
      %p400 = pneg %p129
      %p401 = pneg %p126
      %p402 = scmp.lt.s32.totalorder %s26, 0
      %s403 = scalar_select %p402, %s26, 0
      %s404 = smul.addr %s403, 8
      %s405 = scalar_lea.vmem %s3, %s404
      %p406 = pneg %p155
      %p407 = pneg %p152
      %p408 = scmp.lt.s32.totalorder %s26, 0
      %s409 = scalar_select %p408, %s26, 0
      %s410 = smul.addr %s409, 8
      %s411 = scalar_lea.vmem %s4, %s410
      %p412 = pneg %p181
      %p413 = pneg %p178
      %p414 = scmp.lt.s32.totalorder %s27, 0
      %s415 = scalar_select %p414, %s27, 0
      %s416 = smul.addr %s415, 8
      %s417 = scalar_lea.vmem %s5, %s416
      %p418 = pneg %p207
      %p419 = pneg %p204
      %p420 = scmp.lt.s32.totalorder %s27, 0
      %s421 = scalar_select %p420, %s27, 0
      %s422 = smul.addr %s421, 8
      %s423 = scalar_lea.vmem %s6, %s422
      %p424 = pneg %p233
      %p425 = pneg %p230
      %p426 = pneg %p263
      %p427 = pneg %p260
      %p428 = scmp.lt.s32.totalorder %s24, 1
      %s429 = scalar_select %p428, %s24, 1
      %p430 = scmp.lt.s32.totalorder %s25, 3
      %s431 = scalar_select %p430, %s25, 3
      %p432 = scmp.lt.s32.totalorder %s26, 0
      %s433 = scalar_select %p432, %s26, 0
      %s434 = sadd.s32 %s433, %s431
      %s435 = smul.addr %s429, 4
      %s436 = sadd.s32 %s434, %s435
      %s437 = smul.addr %s436, 8
      %s438 = scalar_lea.vmem %s7, %s437
      %p439 = scmp.lt.s32.totalorder %s24, 1
      %s440 = scalar_select %p439, %s24, 1
      %p441 = scmp.lt.s32.totalorder %s25, 3
      %s442 = scalar_select %p441, %s25, 3
      %p443 = scmp.lt.s32.totalorder %s26, 0
      %s444 = scalar_select %p443, %s26, 0
      %s445 = sadd.s32 %s444, %s442
      %s446 = smul.addr %s440, 4
      %s447 = sadd.s32 %s445, %s446
      %s448 = smul.addr %s447, 8
      %s449 = scalar_lea.vmem %s0, %s448
      %p450 = scmp.lt.s32.totalorder %s24, 1
      %s451 = scalar_select %p450, %s24, 1
      %p452 = scmp.lt.s32.totalorder %s25, 3
      %s453 = scalar_select %p452, %s25, 3
      %p454 = scmp.lt.s32.totalorder %s27, 0
      %s455 = scalar_select %p454, %s27, 0
      %s456 = sadd.s32 %s455, %s453
      %s457 = smul.addr %s451, 4
      %s458 = sadd.s32 %s456, %s457
      %s459 = sadd.s32 %s458, 8
      %s460 = smul.addr %s459, 8
      %s461 = scalar_lea.vmem %s1, %s460
      %p462 = scmp.lt.s32.totalorder %s24, 1
      %s463 = scalar_select %p462, %s24, 1
      %p464 = scmp.lt.s32.totalorder %s25, 3
      %s465 = scalar_select %p464, %s25, 3
      %p466 = scmp.lt.s32.totalorder %s27, 0
      %s467 = scalar_select %p466, %s27, 0
      %s468 = sadd.s32 %s467, %s465
      %s469 = smul.addr %s463, 4
      %s470 = sadd.s32 %s468, %s469
      %s471 = sadd.s32 %s470, 16
      %s472 = smul.addr %s471, 8
      %s473 = scalar_lea.vmem %s2, %s472
      %p474 = scmp.lt.s32.totalorder %s26, 0
      %s475 = scalar_select %p474, %s26, 0
      %s476 = smul.addr %s475, 8
      %s477 = scalar_lea.vmem %s3, %s476
      %p478 = scmp.lt.s32.totalorder %s26, 0
      %s479 = scalar_select %p478, %s26, 0
      %s480 = smul.addr %s479, 8
      %s481 = scalar_lea.vmem %s4, %s480
      %p482 = scmp.lt.s32.totalorder %s27, 0
      %s483 = scalar_select %p482, %s27, 0
      %s484 = smul.addr %s483, 8
      %s485 = scalar_lea.vmem %s5, %s484
      %p486 = scmp.lt.s32.totalorder %s27, 0
      %s487 = scalar_select %p486, %s27, 0
      %s488 = smul.addr %s487, 8
      %s489 = scalar_lea.vmem %s6, %s488
      %p490 = scmp.lt.s32.totalorder %s24, 1
      %s491 = scalar_select %p490, %s24, 1
      %p492 = scmp.lt.s32.totalorder %s25, 3
      %s493 = scalar_select %p492, %s25, 3
      %p494 = scmp.lt.s32.totalorder %s26, 0
      %s495 = scalar_select %p494, %s26, 0
      %s496 = sadd.s32 %s495, %s493
      %s497 = smul.addr %s491, 4
      %s498 = sadd.s32 %s496, %s497
      %s499 = smul.addr %s498, 8
      %s500 = scalar_lea.vmem %s7, %s499
      %p501 = scmp.eq.s32.totalorder %s27, 0
      // Predicated region
      $region49: #{multihead_self_attention.4} parent=47 // pred_check
        %p502 = pneg %p501
      $region50: #{multihead_self_attention.4} parent=47 // pred_check_branch
        %504 = sbr.rel (%p502) target = $region52
      $region51: #{multihead_self_attention.4} parent=47 // pred_region
        %vm505 = vcmask 7168
        %506 = vst.msk [vmem:[#allocation2] sm:$0xff] %vm505, -inf
        %507 = vst.msk [vmem:[#allocation3] sm:$0xff] %vm505, 0.0
        %vm508 = vcmask 64512
        %509 = vst.msk [vmem:[#allocation4] sm:$0xff] %vm508, 0.0
      $region52: #{multihead_self_attention.4} parent=47 // pred_fallthru
        _
      %s510 = smul.u32 %s27, 8
      %s511 = smul.u32 %s26, 8
      %s512 = sadd.s32 %s511, 7
      %p513 = scmp.le.s32.totalorder %s510, %s512
      // Predicated region
      $region53: #{multihead_self_attention.4} parent=47 // pred_check
        %p514 = pneg %p513
      $region54: #{multihead_self_attention.4} parent=47 // pred_check_branch
        %516 = sbr.rel (%p514) target = $region56
      $region55: #{multihead_self_attention.4} parent=47 // pred_region
        %v517 = vld [vmem:[%s449] sm:$0xff]
        %v518 = vld [vmem:[%s477] sm:$0xff]
        %v519 = vld [vmem:[%s481] sm:$0xff]
        %v520 = vmul.f32 %v517, %v518
        %522 = vrot.lane.b32.xlu0 %v519, 4
        %v523 = vpop.permute.xlu0 %522
        %v525 = vmul.f32 %v517, %v523
        %527 = vrot.lane.b32.xlu0 %v525, 124
        %v528 = vpop.permute.xlu0 %527
        %v530 = vsub.f32 %v520, %v528
        %532 = vrot.lane.b32.xlu0 %v518, 4
        %v533 = vpop.permute.xlu0 %532
        %v535 = vmul.f32 %v517, %v533
        %v536 = vmul.f32 %v517, %v519
        %538 = vrot.lane.b32.xlu0 %v536, 4
        %v539 = vpop.permute.xlu0 %538
        %v541 = vadd.f32 %v535, %v539
        %vm542 = vcmask 31744
        %v543 = vsel %vm542, %v530, %v541
        %v544 = vld [vmem:[%s461] sm:$0xff]
        %v545 = vld [vmem:[%s485] sm:$0xff]
        %v546 = vld [vmem:[%s489] sm:$0xff]
        %v547 = vmul.f32 %v544, %v545
        %549 = vrot.lane.b32.xlu0 %v546, 4
        %v550 = vpop.permute.xlu0 %549
        %v552 = vmul.f32 %v544, %v550
        %554 = vrot.lane.b32.xlu0 %v552, 124
        %v555 = vpop.permute.xlu0 %554
        %v557 = vsub.f32 %v547, %v555
        %559 = vrot.lane.b32.xlu0 %v545, 4
        %v560 = vpop.permute.xlu0 %559
        %v562 = vmul.f32 %v544, %v560
        %v563 = vmul.f32 %v544, %v546
        %565 = vrot.lane.b32.xlu0 %v563, 4
        %v566 = vpop.permute.xlu0 %565
        %v568 = vadd.f32 %v562, %v566
        %v569 = vsel %vm542, %v557, %v568
        %vm570 = vcmask 64512
        %v572 = vsel %vm570, %v543, 0
        %v575 = vsel %vm570, %v569, 0
        %577 = vmatprep.subr.mxu0 0.0
        %578 = vmatpush1.xpose.msra.mxu0 %v575
        %579 = vmatprep.subr.mxu0 0.0
        %580 = vmatpush1.xpose.msra.mxu0 0.0
        %581 = vmatprep.subr.mxu0 0.0
        %582 = vmatpush1.xpose.msra.mxu0 0.0
        %583 = vmatprep.subr.mxu0 0.0
        %584 = vmatpush1.xpose.msra.mxu0 0.0
        %585 = vmatprep.subr.mxu0 0.0
        %586 = vmatpush1.xpose.msra.mxu0 0.0
        %587 = vmatprep.subr.mxu0 0.0
        %588 = vmatpush1.xpose.msra.mxu0 0.0
        %589 = vmatprep.subr.mxu0 0.0
        %590 = vmatpush1.xpose.msra.mxu0 0.0
        %591 = vmatprep.subr.mxu0 0.0
        %592 = vmatpush1.xpose.msra.mxu0 0.0
        %593 = vmatprep.subr.mxu0 0.0
        %594 = vmatpush1.xpose.msra.mxu0 0.0
        %595 = vmatprep.subr.mxu0 0.0
        %596 = vmatpush1.xpose.msra.mxu0 0.0
        %597 = vmatprep.subr.mxu0 0.0
        %598 = vmatpush1.xpose.msra.mxu0 0.0
        %599 = vmatprep.subr.mxu0 0.0
        %600 = vmatpush1.xpose.msra.mxu0 0.0
        %601 = vmatprep.subr.mxu0 0.0
        %602 = vmatpush1.xpose.msra.mxu0 0.0
        %603 = vmatprep.subr.mxu0 0.0
        %604 = vmatpush1.xpose.msra.mxu0 0.0
        %605 = vmatprep.subr.mxu0 0.0
        %606 = vmatpush1.xpose.msra.mxu0 0.0
        %607 = vmatprep.subr.mxu0 0.0
        %608 = vmatpush1.xpose.msra.mxu0 0.0
        %609 = vmatprep.subr.mxu0 0.0
        %610 = vmatpush1.xpose.msra.mxu0 0.0
        %611 = vmatprep.subr.mxu0 0.0
        %612 = vmatpush1.xpose.msra.mxu0 0.0
        %613 = vmatprep.subr.mxu0 0.0
        %614 = vmatpush1.xpose.msra.mxu0 0.0
        %615 = vmatprep.subr.mxu0 0.0
        %616 = vmatpush1.xpose.msra.mxu0 0.0
        %617 = vmatprep.subr.mxu0 0.0
        %618 = vmatpush1.xpose.msra.mxu0 0.0
        %619 = vmatprep.subr.mxu0 0.0
        %620 = vmatpush1.xpose.msra.mxu0 0.0
        %621 = vmatprep.subr.mxu0 0.0
        %622 = vmatpush1.xpose.msra.mxu0 0.0
        %623 = vmatprep.subr.mxu0 0.0
        %624 = vmatpush1.xpose.msra.mxu0 0.0
        %625 = vmatprep.subr.mxu0 0.0
        %626 = vmatpush1.xpose.msra.mxu0 0.0
        %627 = vmatprep.subr.mxu0 0.0
        %628 = vmatpush1.xpose.msra.mxu0 0.0
        %629 = vmatprep.subr.mxu0 0.0
        %630 = vmatpush1.xpose.msra.mxu0 0.0
        %631 = vmatprep.subr.mxu0 0.0
        %632 = vmatpush1.xpose.msra.mxu0 0.0
        %633 = vmatprep.subr.mxu0 0.0
        %634 = vmatpush1.xpose.msra.mxu0 0.0
        %635 = vmatprep.subr.mxu0 0.0
        %636 = vmatpush1.xpose.msra.mxu0 0.0
        %637 = vmatprep.subr.mxu0 0.0
        %638 = vmatpush1.xpose.msra.mxu0 0.0
        %639 = vmatprep.subr.mxu0 0.0
        %640 = vmatpush1.xpose.msra.mxu0 0.0
        %641 = vmatprep.mubr.f32.mxu0 0.0
        %642 = vmatmul.mubr.f32.gmra.mrb[0].mxu0 %v572
        %v643 = vpop.f32.mrb[0].mxu0
        %v644 = vadd.f32 0.0, %v643
        %v645 = vpop.f32.mrb[0].mxu0
        %646 = vdwg.mxu0
        %v647 = vlaneseq
        %v648 = vshrl.u32 %v647, 7
        %v649 = vstv %s511
        %v650 = vadd.s32 %v649, %v648
        %v651 = vlaneseq
        %v652 = vand.u32 %v651, 127
        %v653 = vstv %s510
        %v654 = vadd.s32 %v653, %v652
        %vm655 = vcmp.le.s32.totalorder %v654, %v650
        %v656 = vsel %vm655, %v644, -inf
        %v657 = vld [vmem:[#allocation2] sm:$0xff]
        %v658 = vsel %vm570, %v656, -inf
        %659 = vmax.xlane.f32.xlu0 %v658
        %v660 = vpop.xlane.xlu0 %659
        %v661 = vmax.f32 %v657, %v660
        %v662 = vsub.f32 %v657, %v661
        %v663 = vmul.f32 %v662, 1.442695
        %v664 = vpow.pop %v663
        %666 = vset.pattern.permute.xlu0 0
        %667 = vperm.xlu0 %666, %v661
        %v668 = vpop.permute.xlu0 %667
        %v670 = vsub.f32 %v656, %v668
        %v671 = vmul.f32 %v670, 1.442695
        %v672 = vpow.pop %v671
        %v673 = vld [vmem:[#allocation3] sm:$0xff]
        %v674 = vmul.f32 %v664, %v673
        %v675 = vsel %vm570, %v672, 0.0
        %676 = vadd.xlane.f32.xlu0 %v675
        %v677 = vpop.xlane.xlu0 %676
        %v678 = vadd.f32 %v674, %v677
        %vm679 = vcmask 7168
        %680 = vst.msk [vmem:[#allocation3] sm:$0xff] %vm679, %v678
        %v681 = vld [vmem:[#allocation4] sm:$0xff]
        %683 = vset.pattern.permute.xlu0 0
        %684 = vperm.xlu0 %683, %v664
        %v685 = vpop.permute.xlu0 %684
        %v687 = vmul.f32 %v685, %v681
        %v688 = vld [vmem:[%s473] sm:$0xff]
        %v690 = vsel %vm570, %v672, 0
        %692 = vmatprep.subr.mxu0 0.0
        %693 = vmatpush1.msra.mxu0 %v688
        %694 = vmatprep.subr.mxu0 0.0
        %695 = vmatpush1.msra.mxu0 0.0
        %696 = vmatprep.subr.mxu0 0.0
        %697 = vmatpush1.msra.mxu0 0.0
        %698 = vmatprep.subr.mxu0 0.0
        %699 = vmatpush1.msra.mxu0 0.0
        %700 = vmatprep.subr.mxu0 0.0
        %701 = vmatpush1.msra.mxu0 0.0
        %702 = vmatprep.subr.mxu0 0.0
        %703 = vmatpush1.msra.mxu0 0.0
        %704 = vmatprep.subr.mxu0 0.0
        %705 = vmatpush1.msra.mxu0 0.0
        %706 = vmatprep.subr.mxu0 0.0
        %707 = vmatpush1.msra.mxu0 0.0
        %708 = vmatprep.subr.mxu0 0.0
        %709 = vmatpush1.msra.mxu0 0.0
        %710 = vmatprep.subr.mxu0 0.0
        %711 = vmatpush1.msra.mxu0 0.0
        %712 = vmatprep.subr.mxu0 0.0
        %713 = vmatpush1.msra.mxu0 0.0
        %714 = vmatprep.subr.mxu0 0.0
        %715 = vmatpush1.msra.mxu0 0.0
        %716 = vmatprep.subr.mxu0 0.0
        %717 = vmatpush1.msra.mxu0 0.0
        %718 = vmatprep.subr.mxu0 0.0
        %719 = vmatpush1.msra.mxu0 0.0
        %720 = vmatprep.subr.mxu0 0.0
        %721 = vmatpush1.msra.mxu0 0.0
        %722 = vmatprep.subr.mxu0 0.0
        %723 = vmatpush1.msra.mxu0 0.0
        %724 = vmatprep.subr.mxu0 0.0
        %725 = vmatpush1.msra.mxu0 0.0
        %726 = vmatprep.subr.mxu0 0.0
        %727 = vmatpush1.msra.mxu0 0.0
        %728 = vmatprep.subr.mxu0 0.0
        %729 = vmatpush1.msra.mxu0 0.0
        %730 = vmatprep.subr.mxu0 0.0
        %731 = vmatpush1.msra.mxu0 0.0
        %732 = vmatprep.subr.mxu0 0.0
        %733 = vmatpush1.msra.mxu0 0.0
        %734 = vmatprep.subr.mxu0 0.0
        %735 = vmatpush1.msra.mxu0 0.0
        %736 = vmatprep.subr.mxu0 0.0
        %737 = vmatpush1.msra.mxu0 0.0
        %738 = vmatprep.subr.mxu0 0.0
        %739 = vmatpush1.msra.mxu0 0.0
        %740 = vmatprep.subr.mxu0 0.0
        %741 = vmatpush1.msra.mxu0 0.0
        %742 = vmatprep.subr.mxu0 0.0
        %743 = vmatpush1.msra.mxu0 0.0
        %744 = vmatprep.subr.mxu0 0.0
        %745 = vmatpush1.msra.mxu0 0.0
        %746 = vmatprep.subr.mxu0 0.0
        %747 = vmatpush1.msra.mxu0 0.0
        %748 = vmatprep.subr.mxu0 0.0
        %749 = vmatpush1.msra.mxu0 0.0
        %750 = vmatprep.subr.mxu0 0.0
        %751 = vmatpush1.msra.mxu0 0.0
        %752 = vmatprep.subr.mxu0 0.0
        %753 = vmatpush1.msra.mxu0 0.0
        %754 = vmatprep.subr.mxu0 0.0
        %755 = vmatpush1.msra.mxu0 0.0
        %756 = vmatprep.mubr.f32.mxu0 0.0
        %757 = vmatmul.mubr.f32.gmra.mrb[0].mxu0 %v690
        %v758 = vpop.f32.mrb[0].mxu0
        %v759 = vadd.f32 0.0, %v758
        %v760 = vpop.f32.mrb[0].mxu0
        %761 = vdwg.mxu0
        %v762 = vadd.f32 %v687, %v759
        %763 = vst.msk [vmem:[#allocation4] sm:$0xff] %vm570, %v762
        %764 = vst.msk [vmem:[#allocation2] sm:$0xff] %vm679, %v661
      $region56: #{multihead_self_attention.4} parent=47 // pred_fallthru
        _
      // Predicated region
      $region57: #{multihead_self_attention.4} parent=47 // pred_check
        %p765 = pneg %p501
      $region58: #{multihead_self_attention.4} parent=47 // pred_check_branch
        %767 = sbr.rel (%p765) target = $region60
      $region59: #{multihead_self_attention.4} parent=47 // pred_region
        %v768 = vld [vmem:[#allocation4] sm:$0xff]
        %v769 = vld [vmem:[#allocation3] sm:$0xff]
        %v770 = vrcp.pop %v769
        %772 = vset.pattern.permute.xlu0 0
        %773 = vperm.xlu0 %772, %v770
        %v774 = vpop.permute.xlu0 %773
        %v776 = vmul.f32 %v768, %v774
        %vm777 = vcmask 64512
        %778 = vst.msk [vmem:[%s500] sm:$0xff] %vm777, %v776
      $region60: #{multihead_self_attention.4} parent=47 // pred_fallthru
        _
      %p779 = scmp.lt.s32.totalorder %s24, 1
      %s780 = scalar_select %p779, %s24, 1
      %p781 = scmp.lt.s32.totalorder %s25, 3
      %s782 = scalar_select %p781, %s25, 3
      %p783 = scmp.lt.s32.totalorder %s26, 0
      %s784 = scalar_select %p783, %s26, 0
      %s785 = sadd.s32 %s784, %s782
      %s786 = smul.addr %s780, 4
      %s787 = sadd.s32 %s785, %s786
      %s788 = smul.addr %s787, 8
      %s789 = scalar_lea.vmem %s7, %s788
      // Predicated region
      $region61: #{multihead_self_attention.4} parent=47 // pred_check
        %p790 = pneg %p260
      $region62: #{multihead_self_attention.4} parent=47 // pred_check_branch
        %792 = sbr.rel (%p790) target = $region64
      $region63: #{multihead_self_attention.4} parent=47 // pred_region
        _
      $region64: #{multihead_self_attention.4} parent=47 // pred_fallthru
        _
    $region48: #{multihead_self_attention.4} parent=5 // pred_fallthru
      _
    %p793 = scmp.le.s32.totalorder 2, %s13
    // Predicated region
    $region65: #{multihead_self_attention.4} parent=5 // pred_check
      %p794 = pneg %p793
    $region66: #{multihead_self_attention.4} parent=5 // pred_check_branch
      %796 = sbr.rel (%p794) target = $region68
    $region67: #{multihead_self_attention.4} parent=5 // pred_region
      %s797 = ssub.s32 %s13, 2
      // Predicated region
      $region69: #{multihead_self_attention.4} parent=67 // pred_check
        %p798 = pneg %p266
      $region70: #{multihead_self_attention.4} parent=67 // pred_check_branch
        %800 = sbr.rel (%p798) target = $region72
      $region71: #{multihead_self_attention.4} parent=67 // pred_region
        %p801 = scmp.lt.s32.totalorder %s28, 1
        %s802 = scalar_select %p801, %s28, 1
        %p803 = scmp.lt.s32.totalorder %s29, 3
        %s804 = scalar_select %p803, %s29, 3
        %p805 = scmp.lt.s32.totalorder %s30, 0
        %s806 = scalar_select %p805, %s30, 0
        %s807 = sadd.s32 %s806, %s804
        %s808 = smul.addr %s802, 4
        %s809 = sadd.s32 %s807, %s808
        %s810 = smul.addr %s809, 8
        %s811 = scalar_lea.vmem %s7, %s810
      $region72: #{multihead_self_attention.4} parent=67 // pred_fallthru
        _
    $region68: #{multihead_self_attention.4} parent=5 // pred_fallthru
      _
  $region6: #{multihead_self_attention.4} parent=0 // loop_footer
    %s17 = sadd.s32 1, %s13
  $region7: #{multihead_self_attention.4} parent=0 // loop_footer_branch
    %12 = sbr.rel target = $region3
  $region8: #{multihead_self_attention.4} parent=0 // loop_exit
    _

</llo_original>
